<compile_context>
chip_gen: v6e
topology: v6e:2x2x1
jax: 0.10.0
libtpu: 0.0.40
codegen_flags: <defaults>
</compile_context>

<pallas_src>
import jax
import jax.numpy as jnp
from jax import lax
from jax.experimental import pallas as pl
from jax.experimental.pallas import tpu as pltpu

# ---------------- model sizes (small, but shape-consistent with the module) ----
B = 8            # batch
T = 8            # sequence length (time steps)
D = 3 * 60       # InputSize = 180 (hard-coded in the module)
H = 128          # mid_features (small stand-in for 1024); in_features == H (unidirectional)
HEADS = 12       # 4 (emotion) + 2 (sex) + 4 (emotion_center) + 2 (sex_center)
HEADS_PAD = 128  # pad fused head output to a full lane tile (unmasked vst)


# ---------------- Pallas kernel ------------------------------------------------
def lstm_rnn_kernel(x_ref, wih_ref, whh_ref, b_ref, alpha_ref,
                    w_heads_ref, b_heads_ref,
                    outx_ref, heads_ref,
                    gx_ref):
    # ---- prologue: hoisted input projection for all timesteps at once --------
    # x_ref: (T*B, D) bf16 time-major rows (row index = t*B + b).
    # One M=T*B bf16 matmul (f32 accumulate) instead of T matmuls with M=B.
    # Result goes to VMEM scratch so it does not pin vregs across the loop.
    gx_ref[...] = (jnp.dot(x_ref[...], wih_ref[...],
                           preferred_element_type=jnp.float32)
                   + b_ref[...])                                        # (T*B, 4H) f32

    # ---- recurrence: fori_loop with full unroll (T is small & static) --------
    # h/c stay in vregs as loop carries; per step only the h-projection hits MXU.
    # Gate column order (after param prep): [i, f, o, g].
    def step(t, carry):
        h, c = carry
        base = pl.multiple_of(t * B, B)                                 # sublane-aligned
        gx_t = gx_ref[pl.ds(base, B), :]                                # (B, 4H) f32
        g = (jnp.dot(h.astype(jnp.bfloat16), whh_ref[...],
                     preferred_element_type=jnp.float32) + gx_t)        # (B, 4H) f32
        s = jax.nn.sigmoid(g[:, 0:3 * H])                               # one EUP pass, contiguous
        i_g = s[:, 0 * H:1 * H]
        f_g = s[:, 1 * H:2 * H]
        o_g = s[:, 2 * H:3 * H]
        g_g = jnp.tanh(g[:, 3 * H:4 * H])
        c = f_g * c + i_g * g_g
        h = o_g * jnp.tanh(c)
        return (h, c)

    h0 = jnp.zeros((B, H), jnp.float32)
    c0 = jnp.zeros((B, H), jnp.float32)
    h, _c = lax.fori_loop(0, T, step, (h0, c0), unroll=True)

    # ---- epilogue: PReLU on last hidden state + fused 4-head matmul -----------
    alpha = alpha_ref[0]                                                # scalar from SMEM
    out_x = jnp.where(h > 0, h, alpha * h)                              # (B, H) f32
    outx_ref[...] = out_x
    heads_ref[...] = (jnp.dot(out_x.astype(jnp.bfloat16), w_heads_ref[...],
                              preferred_element_type=jnp.float32)
                      + b_heads_ref[...])                               # (B, 128) lane-dense


def prepare_params(params):
    """One-time (per weight set) preprocessing: gate reorder [i,f,g,o]->[i,f,o,g],
    head fusion + lane padding, bf16 casts for MXU operands, SMEM alpha."""
    (wih_t, whh_t, b_lstm, alpha,
     w_emo, b_emo, w_sex, b_sex, w_emoc, b_emoc, w_sexc, b_sexc) = params

    def reorder_gates(w):  # columns [i, f, g, o] -> [i, f, o, g]
        return jnp.concatenate(
            [w[:, 0 * H:1 * H], w[:, 1 * H:2 * H], w[:, 3 * H:4 * H], w[:, 2 * H:3 * H]],
            axis=1)

    wih_k = reorder_gates(wih_t).astype(jnp.bfloat16)                  # (D, 4H) bf16
    whh_k = reorder_gates(whh_t).astype(jnp.bfloat16)                  # (H, 4H) bf16
    b_k = reorder_gates(b_lstm).astype(jnp.float32)                    # (1, 4H) f32

    # Fuse the four heads into a single weight / bias, zero-padded to 128 lanes.
    w_heads = jnp.concatenate([w_emo, w_sex, w_emoc, w_sexc], axis=1)  # (H, 12)
    b_heads = jnp.concatenate([b_emo, b_sex, b_emoc, b_sexc], axis=1)  # (1, 12)
    w_heads = jnp.pad(w_heads, ((0, 0), (0, HEADS_PAD - HEADS))).astype(jnp.bfloat16)
    b_heads = jnp.pad(b_heads, ((0, 0), (0, HEADS_PAD - HEADS))).astype(jnp.float32)

    alpha_smem = alpha.reshape(1).astype(jnp.float32)                  # (1,) scalar
    return (wih_k, whh_k, b_k, alpha_smem, w_heads, b_heads)


def rnn_forward(x, kparams):
    """x: (B, D, T) — same layout the PyTorch module receives (N, C, L)."""
    wih_k, whh_k, b_k, alpha_smem, w_heads, b_heads = kparams

    # (B, D, T) -> (T, B, D) -> time-major rows (T*B, D), bf16 MXU operand.
    x_tb = jnp.transpose(x, (2, 0, 1)).reshape(T * B, D).astype(jnp.bfloat16)

    c2d = lambda i: (0, 0)
    buf1 = pl.Buffered(1)   # grid=(1,): constants need no double-buffering
    out_x, heads = pl.pallas_call(
        lstm_rnn_kernel,
        out_shape=(
            jax.ShapeDtypeStruct((B, H), jnp.float32),          # out_x (post-PReLU)
            jax.ShapeDtypeStruct((B, HEADS_PAD), jnp.float32),  # fused head outputs
        ),
        grid=(1,),
        in_specs=[
            pl.BlockSpec((T * B, D), c2d, pipeline_mode=buf1),          # x (time-major rows)
            pl.BlockSpec((D, 4 * H), c2d, pipeline_mode=buf1),          # W_ih^T (bf16)
            pl.BlockSpec((H, 4 * H), c2d, pipeline_mode=buf1),          # W_hh^T (bf16)
            pl.BlockSpec((1, 4 * H), c2d, pipeline_mode=buf1),          # b_ih + b_hh (f32)
            pl.BlockSpec(memory_space=pltpu.MemorySpace.SMEM),          # PReLU alpha (scalar)
            pl.BlockSpec((H, HEADS_PAD), c2d, pipeline_mode=buf1),      # fused head weights (bf16)
            pl.BlockSpec((1, HEADS_PAD), c2d, pipeline_mode=buf1),      # fused head biases (f32)
        ],
        out_specs=(
            pl.BlockSpec((B, H), c2d),
            pl.BlockSpec((B, HEADS_PAD), c2d),
        ),
        scratch_shapes=[pltpu.VMEM((T * B, 4 * H), jnp.float32)],       # gx scratch
        compiler_params=pltpu.CompilerParams(
            dimension_semantics=("arbitrary",),
            vmem_limit_bytes=32 * 1024 * 1024,
        ),
    )(x_tb, wih_k, whh_k, b_k, alpha_smem, w_heads, b_heads)

    return (out_x,
            heads[:, 0:4],      # out_emotion
            heads[:, 4:6],      # out_sex
            heads[:, 6:10],     # out_emotion_center
            heads[:, 10:12])    # out_sex_center


# ---------------- pure-JAX reference (for correctness check) -------------------
def rnn_reference(x, params):
    (wih_t, whh_t, b_lstm, alpha,
     w_emo, b_emo, w_sex, b_sex, w_emoc, b_emoc, w_sexc, b_sexc) = params
    x_tbd = jnp.transpose(x, (2, 0, 1)).astype(jnp.float32)

    def step(carry, x_t):
        h, c = carry
        gates = x_t @ wih_t + h @ whh_t + b_lstm        # gate order [i, f, g, o]
        i_g = jax.nn.sigmoid(gates[:, 0 * H:1 * H])
        f_g = jax.nn.sigmoid(gates[:, 1 * H:2 * H])
        g_g = jnp.tanh(gates[:, 2 * H:3 * H])
        o_g = jax.nn.sigmoid(gates[:, 3 * H:4 * H])
        c = f_g * c + i_g * g_g
        h = o_g * jnp.tanh(c)
        return (h, c), None

    init = (jnp.zeros((B, H), jnp.float32), jnp.zeros((B, H), jnp.float32))
    (h, _), _ = lax.scan(step, init, x_tbd)
    out_x = jnp.where(h > 0, h, alpha * h)
    return (out_x,
            out_x @ w_emo + b_emo,
            out_x @ w_sex + b_sex,
            out_x @ w_emoc + b_emoc,
            out_x @ w_sexc + b_sexc)


# ---------------- deterministic parameter init ---------------------------------
def init_params(key):
    ks = jax.random.split(key, 12)
    u = lambda k, shape, bound: jax.random.uniform(
        k, shape, jnp.float32, minval=-bound, maxval=bound)
    kl = 1.0 / jnp.sqrt(H)     # PyTorch LSTM init bound
    kh = 1.0 / jnp.sqrt(H)     # Linear(in_features=H) init bound

    wih_t = u(ks[0], (D, 4 * H), kl)           # W_ih^T, gate order [i,f,g,o]
    whh_t = u(ks[1], (H, 4 * H), kl)           # W_hh^T
    b_lstm = u(ks[2], (1, 4 * H), kl) + u(ks[3], (1, 4 * H), kl)   # b_ih + b_hh
    alpha = jnp.full((1, 1), 0.25, jnp.float32)                    # PReLU default

    w_emo = u(ks[4], (H, 4), kh);  b_emo = u(ks[5], (1, 4), kh)
    w_sex = u(ks[6], (H, 2), kh);  b_sex = u(ks[7], (1, 2), kh)
    w_emoc = u(ks[8], (H, 4), kh); b_emoc = u(ks[9], (1, 4), kh)
    w_sexc = u(ks[10], (H, 2), kh); b_sexc = u(ks[11], (1, 2), kh)

    return (wih_t, whh_t, b_lstm, alpha,
            w_emo, b_emo, w_sex, b_sex, w_emoc, b_emoc, w_sexc, b_sexc)


if __name__ == "__main__":
    key = jax.random.PRNGKey(0)
    kx, kp = jax.random.split(key)
    x = jax.random.normal(kx, (B, D, T), jnp.float32)   # same layout as PyTorch input (N, C, L)
    params = init_params(kp)
    kparams = jax.block_until_ready(prepare_params(params))   # one-time weight prep

    outs = jax.block_until_ready(rnn_forward(x, kparams))
    refs = jax.block_until_ready(rnn_reference(x, params))

    # Tolerance accounts for bf16 MXU operands in the kernel vs. f32 XLA reference;
    # all gate/elementwise math and accumulation remain f32.
    for o, r in zip(outs, refs):
        assert o.shape == r.shape and o.dtype == r.dtype
        assert jnp.allclose(o, r, rtol=5e-2, atol=5e-2), float(jnp.max(jnp.abs(o - r)))

    print("KERNEL_OK")
</pallas_src>

<mosaic_0001>
module attributes {stable_mosaic.version = 11 : i64} {
  func.func @lstm_rnn_kernel(%arg0: i32, %arg1: memref<64x180xbf16, #tpu.memory_space<vmem>>, %arg2: memref<180x512xbf16, #tpu.memory_space<vmem>>, %arg3: memref<128x512xbf16, #tpu.memory_space<vmem>>, %arg4: memref<1x512xf32, #tpu.memory_space<vmem>>, %arg5: memref<1xf32, #tpu.memory_space<smem>>, %arg6: memref<128x128xbf16, #tpu.memory_space<vmem>>, %arg7: memref<1x128xf32, #tpu.memory_space<vmem>>, %arg8: memref<8x128xf32, #tpu.memory_space<vmem>>, %arg9: memref<8x128xf32, #tpu.memory_space<vmem>>, %arg10: memref<64x512xf32, #tpu.memory_space<vmem>>) attributes {dimension_semantics = [#tpu.dimension_semantics<arbitrary>], iteration_bounds = array<i64: 1>, scalar_prefetch = 0 : i64, scratch_operands = 1 : i64, tpu.core_type = #tpu.core_type<tc>, window_params = [{pipeline_mode = #tpu.pipeline_mode<synchronous>, transform_indices = @transform_0, window_bounds = array<i64: 64, 180>}, {pipeline_mode = #tpu.pipeline_mode<synchronous>, transform_indices = @transform_1, window_bounds = array<i64: 180, 512>}, {pipeline_mode = #tpu.pipeline_mode<synchronous>, transform_indices = @transform_2, window_bounds = array<i64: 128, 512>}, {pipeline_mode = #tpu.pipeline_mode<synchronous>, transform_indices = @transform_3, window_bounds = array<i64: 1, 512>}, {transform_indices = @transform_4, window_bounds = array<i64: 1>}, {pipeline_mode = #tpu.pipeline_mode<synchronous>, transform_indices = @transform_5, window_bounds = array<i64: 128, 128>}, {pipeline_mode = #tpu.pipeline_mode<synchronous>, transform_indices = @transform_6, window_bounds = array<i64: 1, 128>}, {pipeline_mode = #tpu.pipeline_mode<synchronous>, transform_indices = @transform_7, window_bounds = array<i64: 8, 128>}, {pipeline_mode = #tpu.pipeline_mode<synchronous>, transform_indices = @transform_8, window_bounds = array<i64: 8, 128>}]} {
    %c0 = arith.constant 0 : index
    %c0_0 = arith.constant 0 : index
    %0 = vector.load %arg1[%c0, %c0_0] : memref<64x180xbf16, #tpu.memory_space<vmem>>, vector<64x180xbf16>
    %c0_1 = arith.constant 0 : index
    %c0_2 = arith.constant 0 : index
    %1 = vector.load %arg2[%c0_1, %c0_2] : memref<180x512xbf16, #tpu.memory_space<vmem>>, vector<180x512xbf16>
    %cst = arith.constant dense<0.000000e+00> : vector<64x512xf32>
    %2 = tpu.matmul %0, %1, %cst {dimension_numbers = #tpu.dot_dimension_numbers<[1], [0], [0], [1], [0, 0, 1, 1], [], []>} : vector<64x180xbf16>, vector<180x512xbf16>, vector<64x512xf32> -> vector<64x512xf32>
    %c0_3 = arith.constant 0 : index
    %c0_4 = arith.constant 0 : index
    %3 = vector.load %arg4[%c0_3, %c0_4] : memref<1x512xf32, #tpu.memory_space<vmem>>, vector<1x512xf32>
    %4 = vector.broadcast %3 : vector<1x512xf32> to vector<64x512xf32>
    %5 = arith.addf %2, %4 : vector<64x512xf32>
    %c0_5 = arith.constant 0 : index
    %c0_6 = arith.constant 0 : index
    %6 = vector.load %arg10[%c0_5, %c0_6] : memref<64x512xf32, #tpu.memory_space<vmem>>, vector<64x512xf32>
    tpu.vector_store %arg10[%c0_5, %c0_6], %5 {strides = array<i32>} : memref<64x512xf32, #tpu.memory_space<vmem>>, vector<64x512xf32>,
    %cst_7 = arith.constant 0.000000e+00 : f32
    %7 = vector.broadcast %cst_7 : f32 to vector<8x128xf32>
    %cst_8 = arith.constant 0.000000e+00 : f32
    %8 = vector.broadcast %cst_8 : f32 to vector<8x128xf32>
    %c0_i32 = arith.constant 0 : i32
    %c8_i32 = arith.constant 8 : i32
    %9 = arith.muli %c0_i32, %c8_i32 : i32
    %10 = tpu.assume_multiple %9, 8 : i32
    %11 = arith.index_cast %10 : i32 to index
    %c0_9 = arith.constant 0 : index
    %12 = vector.load %arg10[%11, %c0_9] : memref<64x512xf32, #tpu.memory_space<vmem>>, vector<8x512xf32>
    %13 = arith.truncf %7 : vector<8x128xf32> to vector<8x128xbf16>
    %c0_10 = arith.constant 0 : index
    %c0_11 = arith.constant 0 : index
    %14 = vector.load %arg3[%c0_10, %c0_11] : memref<128x512xbf16, #tpu.memory_space<vmem>>, vector<128x512xbf16>
    %cst_12 = arith.constant dense<0.000000e+00> : vector<8x512xf32>
    %15 = tpu.matmul %13, %14, %cst_12 {dimension_numbers = #tpu.dot_dimension_numbers<[1], [0], [0], [1], [0, 0, 1, 1], [], []>} : vector<8x128xbf16>, vector<128x512xbf16>, vector<8x512xf32> -> vector<8x512xf32>
    %16 = arith.addf %15, %12 : vector<8x512xf32>
    %17 = vector.extract_strided_slice %16 {offsets = [0, 0], sizes = [8, 384], strides = [1, 1]} : vector<8x512xf32> to vector<8x384xf32>
    %18 = arith.negf %17 : vector<8x384xf32>
    %19 = math.exp %18 : vector<8x384xf32>
    %cst_13 = arith.constant 1.000000e+00 : f32
    %20 = vector.broadcast %cst_13 : f32 to vector<8x384xf32>
    %21 = arith.addf %20, %19 : vector<8x384xf32>
    %22 = arith.divf %20, %21 : vector<8x384xf32>
    %23 = vector.extract_strided_slice %22 {offsets = [0, 0], sizes = [8, 128], strides = [1, 1]} : vector<8x384xf32> to vector<8x128xf32>
    %24 = vector.extract_strided_slice %22 {offsets = [0, 128], sizes = [8, 128], strides = [1, 1]} : vector<8x384xf32> to vector<8x128xf32>
    %25 = vector.extract_strided_slice %22 {offsets = [0, 256], sizes = [8, 128], strides = [1, 1]} : vector<8x384xf32> to vector<8x128xf32>
    %26 = vector.extract_strided_slice %16 {offsets = [0, 384], sizes = [8, 128], strides = [1, 1]} : vector<8x512xf32> to vector<8x128xf32>
    %27 = math.tanh %26 : vector<8x128xf32>
    %28 = arith.mulf %24, %8 : vector<8x128xf32>
    %29 = arith.mulf %23, %27 : vector<8x128xf32>
    %30 = arith.addf %28, %29 : vector<8x128xf32>
    %31 = math.tanh %30 : vector<8x128xf32>
    %32 = arith.mulf %25, %31 : vector<8x128xf32>
    %c1_i32 = arith.constant 1 : i32
    %c8_i32_14 = arith.constant 8 : i32
    %33 = arith.muli %c1_i32, %c8_i32_14 : i32
    %34 = tpu.assume_multiple %33, 8 : i32
    %35 = arith.index_cast %34 : i32 to index
    %c0_15 = arith.constant 0 : index
    %36 = vector.load %arg10[%35, %c0_15] : memref<64x512xf32, #tpu.memory_space<vmem>>, vector<8x512xf32>
    %37 = arith.truncf %32 : vector<8x128xf32> to vector<8x128xbf16>
    %c0_16 = arith.constant 0 : index
    %c0_17 = arith.constant 0 : index
    %38 = vector.load %arg3[%c0_16, %c0_17] : memref<128x512xbf16, #tpu.memory_space<vmem>>, vector<128x512xbf16>
    %cst_18 = arith.constant dense<0.000000e+00> : vector<8x512xf32>
    %39 = tpu.matmul %37, %38, %cst_18 {dimension_numbers = #tpu.dot_dimension_numbers<[1], [0], [0], [1], [0, 0, 1, 1], [], []>} : vector<8x128xbf16>, vector<128x512xbf16>, vector<8x512xf32> -> vector<8x512xf32>
    %40 = arith.addf %39, %36 : vector<8x512xf32>
    %41 = vector.extract_strided_slice %40 {offsets = [0, 0], sizes = [8, 384], strides = [1, 1]} : vector<8x512xf32> to vector<8x384xf32>
    %42 = arith.negf %41 : vector<8x384xf32>
    %43 = math.exp %42 : vector<8x384xf32>
    %cst_19 = arith.constant 1.000000e+00 : f32
    %44 = vector.broadcast %cst_19 : f32 to vector<8x384xf32>
    %45 = arith.addf %44, %43 : vector<8x384xf32>
    %46 = arith.divf %44, %45 : vector<8x384xf32>
    %47 = vector.extract_strided_slice %46 {offsets = [0, 0], sizes = [8, 128], strides = [1, 1]} : vector<8x384xf32> to vector<8x128xf32>
    %48 = vector.extract_strided_slice %46 {offsets = [0, 128], sizes = [8, 128], strides = [1, 1]} : vector<8x384xf32> to vector<8x128xf32>
    %49 = vector.extract_strided_slice %46 {offsets = [0, 256], sizes = [8, 128], strides = [1, 1]} : vector<8x384xf32> to vector<8x128xf32>
    %50 = vector.extract_strided_slice %40 {offsets = [0, 384], sizes = [8, 128], strides = [1, 1]} : vector<8x512xf32> to vector<8x128xf32>
    %51 = math.tanh %50 : vector<8x128xf32>
    %52 = arith.mulf %48, %30 : vector<8x128xf32>
    %53 = arith.mulf %47, %51 : vector<8x128xf32>
    %54 = arith.addf %52, %53 : vector<8x128xf32>
    %55 = math.tanh %54 : vector<8x128xf32>
    %56 = arith.mulf %49, %55 : vector<8x128xf32>
    %c2_i32 = arith.constant 2 : i32
    %c8_i32_20 = arith.constant 8 : i32
    %57 = arith.muli %c2_i32, %c8_i32_20 : i32
    %58 = tpu.assume_multiple %57, 8 : i32
    %59 = arith.index_cast %58 : i32 to index
    %c0_21 = arith.constant 0 : index
    %60 = vector.load %arg10[%59, %c0_21] : memref<64x512xf32, #tpu.memory_space<vmem>>, vector<8x512xf32>
    %61 = arith.truncf %56 : vector<8x128xf32> to vector<8x128xbf16>
    %c0_22 = arith.constant 0 : index
    %c0_23 = arith.constant 0 : index
    %62 = vector.load %arg3[%c0_22, %c0_23] : memref<128x512xbf16, #tpu.memory_space<vmem>>, vector<128x512xbf16>
    %cst_24 = arith.constant dense<0.000000e+00> : vector<8x512xf32>
    %63 = tpu.matmul %61, %62, %cst_24 {dimension_numbers = #tpu.dot_dimension_numbers<[1], [0], [0], [1], [0, 0, 1, 1], [], []>} : vector<8x128xbf16>, vector<128x512xbf16>, vector<8x512xf32> -> vector<8x512xf32>
    %64 = arith.addf %63, %60 : vector<8x512xf32>
    %65 = vector.extract_strided_slice %64 {offsets = [0, 0], sizes = [8, 384], strides = [1, 1]} : vector<8x512xf32> to vector<8x384xf32>
    %66 = arith.negf %65 : vector<8x384xf32>
    %67 = math.exp %66 : vector<8x384xf32>
    %cst_25 = arith.constant 1.000000e+00 : f32
    %68 = vector.broadcast %cst_25 : f32 to vector<8x384xf32>
    %69 = arith.addf %68, %67 : vector<8x384xf32>
    %70 = arith.divf %68, %69 : vector<8x384xf32>
    %71 = vector.extract_strided_slice %70 {offsets = [0, 0], sizes = [8, 128], strides = [1, 1]} : vector<8x384xf32> to vector<8x128xf32>
    %72 = vector.extract_strided_slice %70 {offsets = [0, 128], sizes = [8, 128], strides = [1, 1]} : vector<8x384xf32> to vector<8x128xf32>
    %73 = vector.extract_strided_slice %70 {offsets = [0, 256], sizes = [8, 128], strides = [1, 1]} : vector<8x384xf32> to vector<8x128xf32>
    %74 = vector.extract_strided_slice %64 {offsets = [0, 384], sizes = [8, 128], strides = [1, 1]} : vector<8x512xf32> to vector<8x128xf32>
    %75 = math.tanh %74 : vector<8x128xf32>
    %76 = arith.mulf %72, %54 : vector<8x128xf32>
    %77 = arith.mulf %71, %75 : vector<8x128xf32>
    %78 = arith.addf %76, %77 : vector<8x128xf32>
    %79 = math.tanh %78 : vector<8x128xf32>
    %80 = arith.mulf %73, %79 : vector<8x128xf32>
    %c3_i32 = arith.constant 3 : i32
    %c8_i32_26 = arith.constant 8 : i32
    %81 = arith.muli %c3_i32, %c8_i32_26 : i32
    %82 = tpu.assume_multiple %81, 8 : i32
    %83 = arith.index_cast %82 : i32 to index
    %c0_27 = arith.constant 0 : index
    %84 = vector.load %arg10[%83, %c0_27] : memref<64x512xf32, #tpu.memory_space<vmem>>, vector<8x512xf32>
    %85 = arith.truncf %80 : vector<8x128xf32> to vector<8x128xbf16>
    %c0_28 = arith.constant 0 : index
    %c0_29 = arith.constant 0 : index
    %86 = vector.load %arg3[%c0_28, %c0_29] : memref<128x512xbf16, #tpu.memory_space<vmem>>, vector<128x512xbf16>
    %cst_30 = arith.constant dense<0.000000e+00> : vector<8x512xf32>
    %87 = tpu.matmul %85, %86, %cst_30 {dimension_numbers = #tpu.dot_dimension_numbers<[1], [0], [0], [1], [0, 0, 1, 1], [], []>} : vector<8x128xbf16>, vector<128x512xbf16>, vector<8x512xf32> -> vector<8x512xf32>
    %88 = arith.addf %87, %84 : vector<8x512xf32>
    %89 = vector.extract_strided_slice %88 {offsets = [0, 0], sizes = [8, 384], strides = [1, 1]} : vector<8x512xf32> to vector<8x384xf32>
    %90 = arith.negf %89 : vector<8x384xf32>
    %91 = math.exp %90 : vector<8x384xf32>
    %cst_31 = arith.constant 1.000000e+00 : f32
    %92 = vector.broadcast %cst_31 : f32 to vector<8x384xf32>
    %93 = arith.addf %92, %91 : vector<8x384xf32>
    %94 = arith.divf %92, %93 : vector<8x384xf32>
    %95 = vector.extract_strided_slice %94 {offsets = [0, 0], sizes = [8, 128], strides = [1, 1]} : vector<8x384xf32> to vector<8x128xf32>
    %96 = vector.extract_strided_slice %94 {offsets = [0, 128], sizes = [8, 128], strides = [1, 1]} : vector<8x384xf32> to vector<8x128xf32>
    %97 = vector.extract_strided_slice %94 {offsets = [0, 256], sizes = [8, 128], strides = [1, 1]} : vector<8x384xf32> to vector<8x128xf32>
    %98 = vector.extract_strided_slice %88 {offsets = [0, 384], sizes = [8, 128], strides = [1, 1]} : vector<8x512xf32> to vector<8x128xf32>
    %99 = math.tanh %98 : vector<8x128xf32>
    %100 = arith.mulf %96, %78 : vector<8x128xf32>
    %101 = arith.mulf %95, %99 : vector<8x128xf32>
    %102 = arith.addf %100, %101 : vector<8x128xf32>
    %103 = math.tanh %102 : vector<8x128xf32>
    %104 = arith.mulf %97, %103 : vector<8x128xf32>
    %c4_i32 = arith.constant 4 : i32
    %c8_i32_32 = arith.constant 8 : i32
    %105 = arith.muli %c4_i32, %c8_i32_32 : i32
    %106 = tpu.assume_multiple %105, 8 : i32
    %107 = arith.index_cast %106 : i32 to index
    %c0_33 = arith.constant 0 : index
    %108 = vector.load %arg10[%107, %c0_33] : memref<64x512xf32, #tpu.memory_space<vmem>>, vector<8x512xf32>
    %109 = arith.truncf %104 : vector<8x128xf32> to vector<8x128xbf16>
    %c0_34 = arith.constant 0 : index
    %c0_35 = arith.constant 0 : index
    %110 = vector.load %arg3[%c0_34, %c0_35] : memref<128x512xbf16, #tpu.memory_space<vmem>>, vector<128x512xbf16>
    %cst_36 = arith.constant dense<0.000000e+00> : vector<8x512xf32>
    %111 = tpu.matmul %109, %110, %cst_36 {dimension_numbers = #tpu.dot_dimension_numbers<[1], [0], [0], [1], [0, 0, 1, 1], [], []>} : vector<8x128xbf16>, vector<128x512xbf16>, vector<8x512xf32> -> vector<8x512xf32>
    %112 = arith.addf %111, %108 : vector<8x512xf32>
    %113 = vector.extract_strided_slice %112 {offsets = [0, 0], sizes = [8, 384], strides = [1, 1]} : vector<8x512xf32> to vector<8x384xf32>
    %114 = arith.negf %113 : vector<8x384xf32>
    %115 = math.exp %114 : vector<8x384xf32>
    %cst_37 = arith.constant 1.000000e+00 : f32
    %116 = vector.broadcast %cst_37 : f32 to vector<8x384xf32>
    %117 = arith.addf %116, %115 : vector<8x384xf32>
    %118 = arith.divf %116, %117 : vector<8x384xf32>
    %119 = vector.extract_strided_slice %118 {offsets = [0, 0], sizes = [8, 128], strides = [1, 1]} : vector<8x384xf32> to vector<8x128xf32>
    %120 = vector.extract_strided_slice %118 {offsets = [0, 128], sizes = [8, 128], strides = [1, 1]} : vector<8x384xf32> to vector<8x128xf32>
    %121 = vector.extract_strided_slice %118 {offsets = [0, 256], sizes = [8, 128], strides = [1, 1]} : vector<8x384xf32> to vector<8x128xf32>
    %122 = vector.extract_strided_slice %112 {offsets = [0, 384], sizes = [8, 128], strides = [1, 1]} : vector<8x512xf32> to vector<8x128xf32>
    %123 = math.tanh %122 : vector<8x128xf32>
    %124 = arith.mulf %120, %102 : vector<8x128xf32>
    %125 = arith.mulf %119, %123 : vector<8x128xf32>
    %126 = arith.addf %124, %125 : vector<8x128xf32>
    %127 = math.tanh %126 : vector<8x128xf32>
    %128 = arith.mulf %121, %127 : vector<8x128xf32>
    %c5_i32 = arith.constant 5 : i32
    %c8_i32_38 = arith.constant 8 : i32
    %129 = arith.muli %c5_i32, %c8_i32_38 : i32
    %130 = tpu.assume_multiple %129, 8 : i32
    %131 = arith.index_cast %130 : i32 to index
    %c0_39 = arith.constant 0 : index
    %132 = vector.load %arg10[%131, %c0_39] : memref<64x512xf32, #tpu.memory_space<vmem>>, vector<8x512xf32>
    %133 = arith.truncf %128 : vector<8x128xf32> to vector<8x128xbf16>
    %c0_40 = arith.constant 0 : index
    %c0_41 = arith.constant 0 : index
    %134 = vector.load %arg3[%c0_40, %c0_41] : memref<128x512xbf16, #tpu.memory_space<vmem>>, vector<128x512xbf16>
    %cst_42 = arith.constant dense<0.000000e+00> : vector<8x512xf32>
    %135 = tpu.matmul %133, %134, %cst_42 {dimension_numbers = #tpu.dot_dimension_numbers<[1], [0], [0], [1], [0, 0, 1, 1], [], []>} : vector<8x128xbf16>, vector<128x512xbf16>, vector<8x512xf32> -> vector<8x512xf32>
    %136 = arith.addf %135, %132 : vector<8x512xf32>
    %137 = vector.extract_strided_slice %136 {offsets = [0, 0], sizes = [8, 384], strides = [1, 1]} : vector<8x512xf32> to vector<8x384xf32>
    %138 = arith.negf %137 : vector<8x384xf32>
    %139 = math.exp %138 : vector<8x384xf32>
    %cst_43 = arith.constant 1.000000e+00 : f32
    %140 = vector.broadcast %cst_43 : f32 to vector<8x384xf32>
    %141 = arith.addf %140, %139 : vector<8x384xf32>
    %142 = arith.divf %140, %141 : vector<8x384xf32>
    %143 = vector.extract_strided_slice %142 {offsets = [0, 0], sizes = [8, 128], strides = [1, 1]} : vector<8x384xf32> to vector<8x128xf32>
    %144 = vector.extract_strided_slice %142 {offsets = [0, 128], sizes = [8, 128], strides = [1, 1]} : vector<8x384xf32> to vector<8x128xf32>
    %145 = vector.extract_strided_slice %142 {offsets = [0, 256], sizes = [8, 128], strides = [1, 1]} : vector<8x384xf32> to vector<8x128xf32>
    %146 = vector.extract_strided_slice %136 {offsets = [0, 384], sizes = [8, 128], strides = [1, 1]} : vector<8x512xf32> to vector<8x128xf32>
    %147 = math.tanh %146 : vector<8x128xf32>
    %148 = arith.mulf %144, %126 : vector<8x128xf32>
    %149 = arith.mulf %143, %147 : vector<8x128xf32>
    %150 = arith.addf %148, %149 : vector<8x128xf32>
    %151 = math.tanh %150 : vector<8x128xf32>
    %152 = arith.mulf %145, %151 : vector<8x128xf32>
    %c6_i32 = arith.constant 6 : i32
    %c8_i32_44 = arith.constant 8 : i32
    %153 = arith.muli %c6_i32, %c8_i32_44 : i32
    %154 = tpu.assume_multiple %153, 8 : i32
    %155 = arith.index_cast %154 : i32 to index
    %c0_45 = arith.constant 0 : index
    %156 = vector.load %arg10[%155, %c0_45] : memref<64x512xf32, #tpu.memory_space<vmem>>, vector<8x512xf32>
    %157 = arith.truncf %152 : vector<8x128xf32> to vector<8x128xbf16>
    %c0_46 = arith.constant 0 : index
    %c0_47 = arith.constant 0 : index
    %158 = vector.load %arg3[%c0_46, %c0_47] : memref<128x512xbf16, #tpu.memory_space<vmem>>, vector<128x512xbf16>
    %cst_48 = arith.constant dense<0.000000e+00> : vector<8x512xf32>
    %159 = tpu.matmul %157, %158, %cst_48 {dimension_numbers = #tpu.dot_dimension_numbers<[1], [0], [0], [1], [0, 0, 1, 1], [], []>} : vector<8x128xbf16>, vector<128x512xbf16>, vector<8x512xf32> -> vector<8x512xf32>
    %160 = arith.addf %159, %156 : vector<8x512xf32>
    %161 = vector.extract_strided_slice %160 {offsets = [0, 0], sizes = [8, 384], strides = [1, 1]} : vector<8x512xf32> to vector<8x384xf32>
    %162 = arith.negf %161 : vector<8x384xf32>
    %163 = math.exp %162 : vector<8x384xf32>
    %cst_49 = arith.constant 1.000000e+00 : f32
    %164 = vector.broadcast %cst_49 : f32 to vector<8x384xf32>
    %165 = arith.addf %164, %163 : vector<8x384xf32>
    %166 = arith.divf %164, %165 : vector<8x384xf32>
    %167 = vector.extract_strided_slice %166 {offsets = [0, 0], sizes = [8, 128], strides = [1, 1]} : vector<8x384xf32> to vector<8x128xf32>
    %168 = vector.extract_strided_slice %166 {offsets = [0, 128], sizes = [8, 128], strides = [1, 1]} : vector<8x384xf32> to vector<8x128xf32>
    %169 = vector.extract_strided_slice %166 {offsets = [0, 256], sizes = [8, 128], strides = [1, 1]} : vector<8x384xf32> to vector<8x128xf32>
    %170 = vector.extract_strided_slice %160 {offsets = [0, 384], sizes = [8, 128], strides = [1, 1]} : vector<8x512xf32> to vector<8x128xf32>
    %171 = math.tanh %170 : vector<8x128xf32>
    %172 = arith.mulf %168, %150 : vector<8x128xf32>
    %173 = arith.mulf %167, %171 : vector<8x128xf32>
    %174 = arith.addf %172, %173 : vector<8x128xf32>
    %175 = math.tanh %174 : vector<8x128xf32>
    %176 = arith.mulf %169, %175 : vector<8x128xf32>
    %c7_i32 = arith.constant 7 : i32
    %c8_i32_50 = arith.constant 8 : i32
    %177 = arith.muli %c7_i32, %c8_i32_50 : i32
    %178 = tpu.assume_multiple %177, 8 : i32
    %179 = arith.index_cast %178 : i32 to index
    %c0_51 = arith.constant 0 : index
    %180 = vector.load %arg10[%179, %c0_51] : memref<64x512xf32, #tpu.memory_space<vmem>>, vector<8x512xf32>
    %181 = arith.truncf %176 : vector<8x128xf32> to vector<8x128xbf16>
    %c0_52 = arith.constant 0 : index
    %c0_53 = arith.constant 0 : index
    %182 = vector.load %arg3[%c0_52, %c0_53] : memref<128x512xbf16, #tpu.memory_space<vmem>>, vector<128x512xbf16>
    %cst_54 = arith.constant dense<0.000000e+00> : vector<8x512xf32>
    %183 = tpu.matmul %181, %182, %cst_54 {dimension_numbers = #tpu.dot_dimension_numbers<[1], [0], [0], [1], [0, 0, 1, 1], [], []>} : vector<8x128xbf16>, vector<128x512xbf16>, vector<8x512xf32> -> vector<8x512xf32>
    %184 = arith.addf %183, %180 : vector<8x512xf32>
    %185 = vector.extract_strided_slice %184 {offsets = [0, 0], sizes = [8, 384], strides = [1, 1]} : vector<8x512xf32> to vector<8x384xf32>
    %186 = arith.negf %185 : vector<8x384xf32>
    %187 = math.exp %186 : vector<8x384xf32>
    %cst_55 = arith.constant 1.000000e+00 : f32
    %188 = vector.broadcast %cst_55 : f32 to vector<8x384xf32>
    %189 = arith.addf %188, %187 : vector<8x384xf32>
    %190 = arith.divf %188, %189 : vector<8x384xf32>
    %191 = vector.extract_strided_slice %190 {offsets = [0, 0], sizes = [8, 128], strides = [1, 1]} : vector<8x384xf32> to vector<8x128xf32>
    %192 = vector.extract_strided_slice %190 {offsets = [0, 128], sizes = [8, 128], strides = [1, 1]} : vector<8x384xf32> to vector<8x128xf32>
    %193 = vector.extract_strided_slice %190 {offsets = [0, 256], sizes = [8, 128], strides = [1, 1]} : vector<8x384xf32> to vector<8x128xf32>
    %194 = vector.extract_strided_slice %184 {offsets = [0, 384], sizes = [8, 128], strides = [1, 1]} : vector<8x512xf32> to vector<8x128xf32>
    %195 = math.tanh %194 : vector<8x128xf32>
    %196 = arith.mulf %192, %174 : vector<8x128xf32>
    %197 = arith.mulf %191, %195 : vector<8x128xf32>
    %198 = arith.addf %196, %197 : vector<8x128xf32>
    %199 = math.tanh %198 : vector<8x128xf32>
    %200 = arith.mulf %193, %199 : vector<8x128xf32>
    %c8_i32_56 = arith.constant 8 : i32
    %c0_57 = arith.constant 0 : index
    %201 = memref.load %arg5[%c0_57] : memref<1xf32, #tpu.memory_space<smem>>
    %cst_58 = arith.constant 0.000000e+00 : f32
    %202 = vector.broadcast %cst_58 : f32 to vector<8x128xf32>
    %203 = arith.cmpf ogt, %200, %202 : vector<8x128xf32>
    %204 = vector.broadcast %201 : f32 to vector<8x128xf32>
    %205 = arith.mulf %204, %200 : vector<8x128xf32>
    %206 = arith.select %203, %200, %205 : vector<8x128xi1>, vector<8x128xf32>
    %c0_59 = arith.constant 0 : index
    %c0_60 = arith.constant 0 : index
    %207 = vector.load %arg8[%c0_59, %c0_60] : memref<8x128xf32, #tpu.memory_space<vmem>>, vector<8x128xf32>
    tpu.vector_store %arg8[%c0_59, %c0_60], %206 {strides = array<i32>} : memref<8x128xf32, #tpu.memory_space<vmem>>, vector<8x128xf32>,
    %208 = arith.truncf %206 : vector<8x128xf32> to vector<8x128xbf16>
    %c0_61 = arith.constant 0 : index
    %c0_62 = arith.constant 0 : index
    %209 = vector.load %arg6[%c0_61, %c0_62] : memref<128x128xbf16, #tpu.memory_space<vmem>>, vector<128x128xbf16>
    %cst_63 = arith.constant dense<0.000000e+00> : vector<8x128xf32>
    %210 = tpu.matmul %208, %209, %cst_63 {dimension_numbers = #tpu.dot_dimension_numbers<[1], [0], [0], [1], [0, 0, 1, 1], [], []>} : vector<8x128xbf16>, vector<128x128xbf16>, vector<8x128xf32> -> vector<8x128xf32>
    %c0_64 = arith.constant 0 : index
    %c0_65 = arith.constant 0 : index
    %211 = vector.load %arg7[%c0_64, %c0_65] : memref<1x128xf32, #tpu.memory_space<vmem>>, vector<1x128xf32>
    %212 = vector.broadcast %211 : vector<1x128xf32> to vector<8x128xf32>
    %213 = arith.addf %210, %212 : vector<8x128xf32>
    %c0_66 = arith.constant 0 : index
    %c0_67 = arith.constant 0 : index
    %214 = vector.load %arg9[%c0_66, %c0_67] : memref<8x128xf32, #tpu.memory_space<vmem>>, vector<8x128xf32>
    tpu.vector_store %arg9[%c0_66, %c0_67], %213 {strides = array<i32>} : memref<8x128xf32, #tpu.memory_space<vmem>>, vector<8x128xf32>,
    return
  }
  func.func @transform_0(%arg0: i32) -> (i32, i32) {
    %c0_i32 = arith.constant 0 : i32
    %c0_i32_0 = arith.constant 0 : i32
    %c0_i32_1 = arith.constant 0 : i32
    return %c0_i32, %c0_i32_0 : i32, i32
  }
  func.func @transform_1(%arg0: i32) -> (i32, i32) {
    %c0_i32 = arith.constant 0 : i32
    %c0_i32_0 = arith.constant 0 : i32
    %c0_i32_1 = arith.constant 0 : i32
    return %c0_i32, %c0_i32_0 : i32, i32
  }
  func.func @transform_2(%arg0: i32) -> (i32, i32) {
    %c0_i32 = arith.constant 0 : i32
    %c0_i32_0 = arith.constant 0 : i32
    %c0_i32_1 = arith.constant 0 : i32
    return %c0_i32, %c0_i32_0 : i32, i32
  }
  func.func @transform_3(%arg0: i32) -> (i32, i32) {
    %c0_i32 = arith.constant 0 : i32
    %c0_i32_0 = arith.constant 0 : i32
    %c0_i32_1 = arith.constant 0 : i32
    return %c0_i32, %c0_i32_0 : i32, i32
  }
  func.func @transform_4(%arg0: i32) -> i32 {
    %c0_i32 = arith.constant 0 : i32
    %c0_i32_0 = arith.constant 0 : i32
    return %c0_i32 : i32
  }
  func.func @transform_5(%arg0: i32) -> (i32, i32) {
    %c0_i32 = arith.constant 0 : i32
    %c0_i32_0 = arith.constant 0 : i32
    %c0_i32_1 = arith.constant 0 : i32
    return %c0_i32, %c0_i32_0 : i32, i32
  }
  func.func @transform_6(%arg0: i32) -> (i32, i32) {
    %c0_i32 = arith.constant 0 : i32
    %c0_i32_0 = arith.constant 0 : i32
    %c0_i32_1 = arith.constant 0 : i32
    return %c0_i32, %c0_i32_0 : i32, i32
  }
  func.func @transform_7(%arg0: i32) -> (i32, i32) {
    %c0_i32 = arith.constant 0 : i32
    %c0_i32_0 = arith.constant 0 : i32
    %c0_i32_1 = arith.constant 0 : i32
    return %c0_i32, %c0_i32_0 : i32, i32
  }
  func.func @transform_8(%arg0: i32) -> (i32, i32) {
    %c0_i32 = arith.constant 0 : i32
    %c0_i32_0 = arith.constant 0 : i32
    %c0_i32_1 = arith.constant 0 : i32
    return %c0_i32, %c0_i32_0 : i32, i32
  }
}

</mosaic_0001>

<llo_original>
// kernel: tpu_custom_call.1
$region0: #{tpu_custom_call.1}
  #allocation0 [shape = 'u32[]', space=smem, size = 0x4, offset = 0x4, fixed_abs, tag = 'smem constant byte address 0x4 - core index']
  #allocation1 [shape = 'u32[144,128]{1,0:T(1,128)}', space=vmem, size = 0x12000, scoped, tag = 'internal scratch']
  #allocation2 [shape = 'f32[64,512]{1,0:T(8,128)}', space=vmem, size = 0x20000, scoped, tag = 'scratch operand']
  #allocation3 [shape = 'f32[1]{0:T(128)S(6)}', space=smem, size = 0x200, scoped, tag = 'scoped memory for tpu_custom_call.1']
  %s0 = inlined_call_operand.hbm [shape: bf16[64,180], index: 0, kind: input, shape index: {}]
  %s1 = inlined_call_operand.hbm [shape: bf16[180,512], index: 1, kind: input, shape index: {}]
  %s2 = inlined_call_operand.hbm [shape: bf16[128,512], index: 2, kind: input, shape index: {}]
  %s3 = inlined_call_operand.vmem [shape: f32[1,512], index: 3, kind: input, shape index: {}]
  %s4 = inlined_call_operand.<no memory space> [shape: f32[1], index: 4, kind: input, shape index: {}]
  %s5 = inlined_call_operand.hbm [shape: bf16[128,128], index: 5, kind: input, shape index: {}]
  %s6 = inlined_call_operand.vmem [shape: f32[1,128], index: 6, kind: input, shape index: {}]
  %s7 = inlined_call_operand.hbm [shape: f32[8,128], index: 7, kind: output, shape index: {0}]
  %s8 = inlined_call_operand.hbm [shape: f32[8,128], index: 8, kind: output, shape index: {1}]
  %9 = xla_tuple %s7, %s8
  %s10 = sld [smem:[#allocation0]]
  $region62: #{tpu_custom_call.1} parent=0
    _
  %s12 = ssub.s32 1, %s10
  %s13 = scalar_select 0, %s12, %s10
  %14 = sst [smem:[#allocation3]] %s4
  $region1: #{tpu_custom_call.1} parent=0
    #allocation4 [shape = 'u8[32768]{0}', space=vmem, size = 0x8000, scoped, tag = 'input window, operand 0, single buffered']
    #allocation5 [shape = 's32[1]{0}', space=sflag, size = 0x4, scoped, tag = 'scoped memory for tpu_custom_call.1']
    #allocation6 [shape = 's32[1]{0}', space=sflag, size = 0x4, scoped, tag = 'scoped memory for tpu_custom_call.1']
    #allocation7 [shape = 'u8[188416]{0}', space=vmem, size = 0x2e000, scoped, tag = 'input window, operand 1, single buffered']
    #allocation8 [shape = 's32[1]{0}', space=sflag, size = 0x4, scoped, tag = 'scoped memory for tpu_custom_call.1']
    #allocation9 [shape = 'u8[131072]{0}', space=vmem, size = 0x20000, scoped, tag = 'input window, operand 2, single buffered']
    #allocation10 [shape = 'u8[32768]{0}', space=vmem, size = 0x8000, scoped, tag = 'input window, operand 5, single buffered']
    #allocation11 [shape = 's32[1]{0}', space=sflag, size = 0x4, scoped, tag = 'scoped memory for tpu_custom_call.1']
    #allocation12 [shape = 'u8[4096]{0}', space=vmem, size = 0x1000, scoped, tag = 'output window, operand 0, single buffered']
    #allocation13 [shape = 'u8[4096]{0}', space=vmem, size = 0x1000, scoped, tag = 'output window, operand 1, single buffered']
    #allocation14 [shape = 's32[1]{0}', space=sflag, size = 0x4, scoped, tag = 'scoped memory for tpu_custom_call.1']
    %15 = vsyncpa [#allocation5], 0
    %16 = vsyncpa [#allocation8], 0
    %17 = vsyncpa [#allocation11], 0
    %18 = vsyncpa [#allocation6], 0
    %19 = vsyncpa [#allocation14], 0
    // Predicated region
    $region2: #{tpu_custom_call.1} parent=1 // pred_check
      _
    $region3: #{tpu_custom_call.1} parent=1 // pred_check_branch
      %21 = sbr.rel (0) target = $region5
    $region4: #{tpu_custom_call.1} parent=1 // pred_region
      %s23 = ssub.s32 1024, 1024
      %24 = vsyncadd [#allocation5], %s23
      %s25 = sshll.u32 [#allocation4], 4
      %s26 = int_to_ptr.vmem [resolvable:$true] %s25
      %31 = dma.hbm_to_vmem [thread:$0]  %s0, 1024, %s26, [#allocation5], 128, 128, 8
    $region5: #{tpu_custom_call.1} parent=1 // pred_fallthru
      _
    // Predicated region
    $region6: #{tpu_custom_call.1} parent=1 // pred_check
      _
    $region7: #{tpu_custom_call.1} parent=1 // pred_check_branch
      %33 = sbr.rel (0) target = $region9
    $region8: #{tpu_custom_call.1} parent=1 // pred_region
      %s35 = ssub.s32 5888, 5888
      %36 = vsyncadd [#allocation8], %s35
      %s37 = sshll.u32 [#allocation7], 4
      %s38 = int_to_ptr.vmem [resolvable:$true] %s37
      %43 = dma.hbm_to_vmem [thread:$0]  %s1, 5888, %s38, [#allocation8], 256, 256, 16
    $region9: #{tpu_custom_call.1} parent=1 // pred_fallthru
      _
    // Predicated region
    $region10: #{tpu_custom_call.1} parent=1 // pred_check
      _
    $region11: #{tpu_custom_call.1} parent=1 // pred_check_branch
      %45 = sbr.rel (0) target = $region13
    $region12: #{tpu_custom_call.1} parent=1 // pred_region
      %s47 = ssub.s32 4096, 4096
      %48 = vsyncadd [#allocation8], %s47
      %s49 = sshll.u32 [#allocation9], 4
      %s50 = int_to_ptr.vmem [resolvable:$true] %s49
      %55 = dma.hbm_to_vmem [thread:$0]  %s2, 4096, %s50, [#allocation8], 256, 256, 16
    $region13: #{tpu_custom_call.1} parent=1 // pred_fallthru
      _
    // Predicated region
    $region14: #{tpu_custom_call.1} parent=1 // pred_check
      _
    $region15: #{tpu_custom_call.1} parent=1 // pred_check_branch
      %57 = sbr.rel (0) target = $region17
    $region16: #{tpu_custom_call.1} parent=1 // pred_region
      _
    $region17: #{tpu_custom_call.1} parent=1 // pred_fallthru
      _
    // Predicated region
    $region18: #{tpu_custom_call.1} parent=1 // pred_check
      _
    $region19: #{tpu_custom_call.1} parent=1 // pred_check_branch
      %59 = sbr.rel (0) target = $region21
    $region20: #{tpu_custom_call.1} parent=1 // pred_region
      _
    $region21: #{tpu_custom_call.1} parent=1 // pred_fallthru
      _
    // Predicated region
    $region22: #{tpu_custom_call.1} parent=1 // pred_check
      _
    $region23: #{tpu_custom_call.1} parent=1 // pred_check_branch
      %61 = sbr.rel (0) target = $region25
    $region24: #{tpu_custom_call.1} parent=1 // pred_region
      %s63 = ssub.s32 1024, 1024
      %64 = vsyncadd [#allocation11], %s63
      %s65 = sshll.u32 [#allocation10], 4
      %s66 = int_to_ptr.vmem [resolvable:$true] %s65
      %71 = dma.hbm_to_vmem [thread:$0]  %s5, 1024, %s66, [#allocation11], 64, 64, 4
    $region25: #{tpu_custom_call.1} parent=1 // pred_fallthru
      _
    // Predicated region
    $region26: #{tpu_custom_call.1} parent=1 // pred_check
      _
    $region27: #{tpu_custom_call.1} parent=1 // pred_check_branch
      %73 = sbr.rel (0) target = $region29
    $region28: #{tpu_custom_call.1} parent=1 // pred_region
      _
    $region29: #{tpu_custom_call.1} parent=1 // pred_fallthru
      _
    // Predicated region
    $region30: #{tpu_custom_call.1} parent=1 // pred_check
      _
    $region31: #{tpu_custom_call.1} parent=1 // pred_check_branch
      %75 = sbr.rel (0) target = $region33
    $region32: #{tpu_custom_call.1} parent=1 // pred_region
      %76 = dma.done [#allocation5], 1024
    $region33: #{tpu_custom_call.1} parent=1 // pred_fallthru
      _
    // Predicated region
    $region34: #{tpu_custom_call.1} parent=1 // pred_check
      _
    $region35: #{tpu_custom_call.1} parent=1 // pred_check_branch
      %78 = sbr.rel (0) target = $region37
    $region36: #{tpu_custom_call.1} parent=1 // pred_region
      %79 = dma.done [#allocation8], 5888
    $region37: #{tpu_custom_call.1} parent=1 // pred_fallthru
      _
    // Predicated region
    $region38: #{tpu_custom_call.1} parent=1 // pred_check
      _
    $region39: #{tpu_custom_call.1} parent=1 // pred_check_branch
      %81 = sbr.rel (0) target = $region41
    $region40: #{tpu_custom_call.1} parent=1 // pred_region
      %82 = dma.done [#allocation8], 4096
    $region41: #{tpu_custom_call.1} parent=1 // pred_fallthru
      _
    // Predicated region
    $region42: #{tpu_custom_call.1} parent=1 // pred_check
      _
    $region43: #{tpu_custom_call.1} parent=1 // pred_check_branch
      %84 = sbr.rel (0) target = $region45
    $region44: #{tpu_custom_call.1} parent=1 // pred_region
      %85 = dma.done [#allocation11], 1024
    $region45: #{tpu_custom_call.1} parent=1 // pred_fallthru
      _
    %v87 = vld [vmem:[#allocation4] sm:$0xff]
    %v88 = vld [vmem:[#allocation4 + $0x8] sm:$0xff]
    %v89 = vld [vmem:[#allocation4 + $0x10] sm:$0xff]
    %v90 = vld [vmem:[#allocation4 + $0x18] sm:$0xff]
    %v91 = vld [vmem:[#allocation4 + $0x20] sm:$0xff]
    %v92 = vld [vmem:[#allocation4 + $0x28] sm:$0xff]
    %v93 = vld [vmem:[#allocation4 + $0x30] sm:$0xff]
    %v94 = vld [vmem:[#allocation4 + $0x38] sm:$0xff]
    %v95 = vld [vmem:[#allocation7] sm:$0xff]
    %v96 = vld [vmem:[#allocation7 + $0x8] sm:$0xff]
    %v97 = vld [vmem:[#allocation7 + $0x10] sm:$0xff]
    %v98 = vld [vmem:[#allocation7 + $0x18] sm:$0xff]
    %v99 = vld [vmem:[#allocation7 + $0x20] sm:$0xff]
    %v100 = vld [vmem:[#allocation7 + $0x28] sm:$0xff]
    %v101 = vld [vmem:[#allocation7 + $0x30] sm:$0xff]
    %v102 = vld [vmem:[#allocation7 + $0x38] sm:$0xff]
    %v103 = vld [vmem:[#allocation7 + $0x40] sm:$0xff]
    %v104 = vld [vmem:[#allocation7 + $0x48] sm:$0xff]
    %v105 = vld [vmem:[#allocation7 + $0x50] sm:$0xff]
    %v106 = vld [vmem:[#allocation7 + $0x58] sm:$0xff]
    %v107 = vld [vmem:[#allocation7 + $0x60] sm:$0xff]
    %v108 = vld [vmem:[#allocation7 + $0x68] sm:$0xff]
    %v109 = vld [vmem:[#allocation7 + $0x70] sm:$0xff]
    %v110 = vld [vmem:[#allocation7 + $0x78] sm:$0xff]
    %v111 = vld [vmem:[#allocation7 + $0x80] sm:$0xff]
    %v112 = vld [vmem:[#allocation7 + $0x88] sm:$0xff]
    %v113 = vld [vmem:[#allocation7 + $0x90] sm:$0xff]
    %v114 = vld [vmem:[#allocation7 + $0x98] sm:$0xff]
    %v115 = vld [vmem:[#allocation7 + $0xa0] sm:$0xff]
    %v116 = vld [vmem:[#allocation7 + $0xa8] sm:$0xff]
    %v117 = vld [vmem:[#allocation7 + $0xb0] sm:$0xff]
    %v118 = vld [vmem:[#allocation7 + $0xb8] sm:$0xff]
    %v119 = vld [vmem:[#allocation7 + $0xc0] sm:$0xff]
    %v120 = vld [vmem:[#allocation7 + $0xc8] sm:$0xff]
    %v121 = vld [vmem:[#allocation7 + $0xd0] sm:$0xff]
    %v122 = vld [vmem:[#allocation7 + $0xd8] sm:$0xff]
    %v123 = vld [vmem:[#allocation7 + $0xe0] sm:$0xff]
    %v124 = vld [vmem:[#allocation7 + $0xe8] sm:$0xff]
    %v125 = vld [vmem:[#allocation7 + $0xf0] sm:$0xff]
    %v126 = vld [vmem:[#allocation7 + $0xf8] sm:$0xff]
    %v127 = vld [vmem:[#allocation7 + $0x100] sm:$0xff]
    %v128 = vld [vmem:[#allocation7 + $0x108] sm:$0xff]
    %v129 = vld [vmem:[#allocation7 + $0x110] sm:$0xff]
    %v130 = vld [vmem:[#allocation7 + $0x118] sm:$0xff]
    %v131 = vld [vmem:[#allocation7 + $0x120] sm:$0xff]
    %v132 = vld [vmem:[#allocation7 + $0x128] sm:$0xff]
    %v133 = vld [vmem:[#allocation7 + $0x130] sm:$0xff]
    %v134 = vld [vmem:[#allocation7 + $0x138] sm:$0xff]
    %v135 = vld [vmem:[#allocation7 + $0x140] sm:$0xff]
    %v136 = vld [vmem:[#allocation7 + $0x148] sm:$0xff]
    %v137 = vld [vmem:[#allocation7 + $0x150] sm:$0xff]
    %v138 = vld [vmem:[#allocation7 + $0x158] sm:$0xff]
    %v139 = vld [vmem:[#allocation7 + $0x160] sm:$0x33]
    %v140 = vld [vmem:[#allocation7 + $0x168] sm:$0x33]
    %v141 = vld [vmem:[%s3] sm:$0xf]
    %v143 = vlaneseq
    %v144 = vshrl.u32 %v143, 7
    %v145 = vsub.s32 0, %v144
    %v146 = vrot.slane %v141, %v145
    %v147 = vlaneseq
    %v148 = vshrl.u32 %v147, 7
    %v149 = vsub.s32 1, %v148
    %v150 = vrot.slane %v141, %v149
    %v151 = vlaneseq
    %v152 = vshrl.u32 %v151, 7
    %v153 = vsub.s32 2, %v152
    %v154 = vrot.slane %v141, %v153
    %v155 = vlaneseq
    %v156 = vshrl.u32 %v155, 7
    %v157 = vsub.s32 3, %v156
    %v158 = vrot.slane %v141, %v157
    %v171 = vunpack.c.l.b16 %v87
    %v172 = vunpack.c.h.b16 %v87
    %v173 = vunpack.c.l.b16 %v88
    %v174 = vunpack.c.h.b16 %v88
    %v175 = vunpack.c.l.b16 %v89
    %v176 = vunpack.c.h.b16 %v89
    %v177 = vunpack.c.l.b16 %v90
    %v178 = vunpack.c.h.b16 %v90
    %v179 = vunpack.c.l.b16 %v91
    %v180 = vunpack.c.h.b16 %v91
    %v181 = vunpack.c.l.b16 %v92
    %v182 = vunpack.c.h.b16 %v92
    %v183 = vunpack.c.l.b16 %v93
    %v184 = vunpack.c.h.b16 %v93
    %v185 = vunpack.c.l.b16 %v94
    %v186 = vunpack.c.h.b16 %v94
    %v187 = vpack.c.b16 %v173, %v171
    %v188 = vpack.c.b16 %v174, %v172
    %v189 = vpack.c.b16 %v177, %v175
    %v190 = vpack.c.b16 %v178, %v176
    %v191 = vpack.c.b16 %v181, %v179
    %v192 = vpack.c.b16 %v182, %v180
    %v193 = vpack.c.b16 %v185, %v183
    %v194 = vpack.c.b16 %v186, %v184
    %v245 = vunpack.c.l.b16 %v95
    %v246 = vunpack.c.h.b16 %v95
    %v247 = vunpack.c.l.b16 %v96
    %v248 = vunpack.c.h.b16 %v96
    %v249 = vunpack.c.l.b16 %v97
    %v250 = vunpack.c.h.b16 %v97
    %v251 = vunpack.c.l.b16 %v98
    %v252 = vunpack.c.h.b16 %v98
    %v253 = vunpack.c.l.b16 %v99
    %v254 = vunpack.c.h.b16 %v99
    %v255 = vunpack.c.l.b16 %v100
    %v256 = vunpack.c.h.b16 %v100
    %v257 = vunpack.c.l.b16 %v101
    %v258 = vunpack.c.h.b16 %v101
    %v259 = vunpack.c.l.b16 %v102
    %v260 = vunpack.c.h.b16 %v102
    %v261 = vunpack.c.l.b16 %v103
    %v262 = vunpack.c.h.b16 %v103
    %v263 = vunpack.c.l.b16 %v104
    %v264 = vunpack.c.h.b16 %v104
    %v265 = vunpack.c.l.b16 %v105
    %v266 = vunpack.c.h.b16 %v105
    %v267 = vunpack.c.l.b16 %v106
    %v268 = vunpack.c.h.b16 %v106
    %v269 = vunpack.c.l.b16 %v107
    %v270 = vunpack.c.h.b16 %v107
    %v271 = vunpack.c.l.b16 %v108
    %v272 = vunpack.c.h.b16 %v108
    %v273 = vunpack.c.l.b16 %v109
    %v274 = vunpack.c.h.b16 %v109
    %v275 = vunpack.c.l.b16 %v110
    %v276 = vunpack.c.h.b16 %v110
    %v277 = vunpack.c.l.b16 %v111
    %v278 = vunpack.c.h.b16 %v111
    %v279 = vunpack.c.l.b16 %v112
    %v280 = vunpack.c.h.b16 %v112
    %v281 = vunpack.c.l.b16 %v113
    %v282 = vunpack.c.h.b16 %v113
    %v283 = vunpack.c.l.b16 %v114
    %v284 = vunpack.c.h.b16 %v114
    %v285 = vunpack.c.l.b16 %v115
    %v286 = vunpack.c.h.b16 %v115
    %v287 = vunpack.c.l.b16 %v116
    %v288 = vunpack.c.h.b16 %v116
    %v289 = vunpack.c.l.b16 %v117
    %v290 = vunpack.c.h.b16 %v117
    %v291 = vunpack.c.l.b16 %v118
    %v292 = vunpack.c.h.b16 %v118
    %v293 = vunpack.c.l.b16 %v119
    %v294 = vunpack.c.h.b16 %v119
    %v295 = vunpack.c.l.b16 %v120
    %v296 = vunpack.c.h.b16 %v120
    %v297 = vunpack.c.l.b16 %v121
    %v298 = vunpack.c.h.b16 %v121
    %v299 = vunpack.c.l.b16 %v122
    %v300 = vunpack.c.h.b16 %v122
    %v301 = vunpack.c.l.b16 %v123
    %v302 = vunpack.c.h.b16 %v123
    %v303 = vunpack.c.l.b16 %v124
    %v304 = vunpack.c.h.b16 %v124
    %v305 = vunpack.c.l.b16 %v125
    %v306 = vunpack.c.h.b16 %v125
    %v307 = vunpack.c.l.b16 %v126
    %v308 = vunpack.c.h.b16 %v126
    %v309 = vunpack.c.l.b16 %v127
    %v310 = vunpack.c.h.b16 %v127
    %v311 = vunpack.c.l.b16 %v128
    %v312 = vunpack.c.h.b16 %v128
    %v313 = vunpack.c.l.b16 %v129
    %v314 = vunpack.c.h.b16 %v129
    %v315 = vunpack.c.l.b16 %v130
    %v316 = vunpack.c.h.b16 %v130
    %v317 = vunpack.c.l.b16 %v131
    %v318 = vunpack.c.h.b16 %v131
    %v319 = vunpack.c.l.b16 %v132
    %v320 = vunpack.c.h.b16 %v132
    %v321 = vunpack.c.l.b16 %v133
    %v322 = vunpack.c.h.b16 %v133
    %v323 = vunpack.c.l.b16 %v134
    %v324 = vunpack.c.h.b16 %v134
    %v325 = vunpack.c.l.b16 %v135
    %v326 = vunpack.c.h.b16 %v135
    %v327 = vunpack.c.l.b16 %v136
    %v328 = vunpack.c.h.b16 %v136
    %v329 = vunpack.c.l.b16 %v137
    %v330 = vunpack.c.h.b16 %v137
    %v331 = vunpack.c.l.b16 %v138
    %v332 = vunpack.c.h.b16 %v138
    %v333 = vunpack.c.l.b16 %v139
    %v334 = vunpack.c.h.b16 %v139
    %v335 = vunpack.c.l.b16 %v140
    %v336 = vunpack.c.h.b16 %v140
    %v337 = vpack.c.b16 %v249, %v245
    %v338 = vpack.c.b16 %v250, %v246
    %v339 = vpack.c.b16 %v251, %v247
    %v340 = vpack.c.b16 %v252, %v248
    %v341 = vpack.c.b16 %v257, %v253
    %v342 = vpack.c.b16 %v258, %v254
    %v343 = vpack.c.b16 %v259, %v255
    %v344 = vpack.c.b16 %v260, %v256
    %v345 = vpack.c.b16 %v265, %v261
    %v346 = vpack.c.b16 %v266, %v262
    %v347 = vpack.c.b16 %v267, %v263
    %v348 = vpack.c.b16 %v268, %v264
    %v349 = vpack.c.b16 %v273, %v269
    %v350 = vpack.c.b16 %v274, %v270
    %v351 = vpack.c.b16 %v275, %v271
    %v352 = vpack.c.b16 %v276, %v272
    %v353 = vpack.c.b16 %v281, %v277
    %v354 = vpack.c.b16 %v282, %v278
    %v355 = vpack.c.b16 %v283, %v279
    %v356 = vpack.c.b16 %v284, %v280
    %v357 = vpack.c.b16 %v289, %v285
    %v358 = vpack.c.b16 %v290, %v286
    %v359 = vpack.c.b16 %v291, %v287
    %v360 = vpack.c.b16 %v292, %v288
    %v361 = vpack.c.b16 %v297, %v293
    %v362 = vpack.c.b16 %v298, %v294
    %v363 = vpack.c.b16 %v299, %v295
    %v364 = vpack.c.b16 %v300, %v296
    %v365 = vpack.c.b16 %v305, %v301
    %v366 = vpack.c.b16 %v306, %v302
    %v367 = vpack.c.b16 %v307, %v303
    %v368 = vpack.c.b16 %v308, %v304
    %v369 = vpack.c.b16 %v313, %v309
    %v370 = vpack.c.b16 %v314, %v310
    %v371 = vpack.c.b16 %v315, %v311
    %v372 = vpack.c.b16 %v316, %v312
    %v373 = vpack.c.b16 %v321, %v317
    %v374 = vpack.c.b16 %v322, %v318
    %v375 = vpack.c.b16 %v323, %v319
    %v376 = vpack.c.b16 %v324, %v320
    %v377 = vpack.c.b16 %v329, %v325
    %v378 = vpack.c.b16 %v330, %v326
    %v379 = vpack.c.b16 %v331, %v327
    %v380 = vpack.c.b16 %v332, %v328
    %v381 = vpack.c.b16 %v333, %v333
    %v382 = vpack.c.b16 %v334, %v334
    %v383 = vpack.c.b16 %v335, %v335
    %v384 = vpack.c.b16 %v336, %v336
    %vm429 = vcmask 424960
    %v431 = vsel %vm429, %v188, 0
    %v434 = vsel %vm429, %v190, 0
    %v437 = vsel %vm429, %v192, 0
    %v440 = vsel %vm429, %v194, 0
    %vm442 = vcmask 1041408
    %v444 = vsel %vm442, %v381, 0
    %v447 = vsel %vm442, %v382, 0
    %v450 = vsel %vm442, %v383, 0
    %v453 = vsel %vm442, %v384, 0
    %455 = vmatprep.subr.bf16.mxu0 %v366
    %456 = vmatpush1.bf16.msra.mxu0 %v365
    %457 = vmatprep.subr.bf16.mxu0 %v362
    %458 = vmatpush1.bf16.msra.mxu0 %v361
    %459 = vmatprep.subr.bf16.mxu0 %v358
    %460 = vmatpush1.bf16.msra.mxu0 %v357
    %461 = vmatprep.subr.bf16.mxu0 %v354
    %462 = vmatpush1.bf16.msra.mxu0 %v353
    %463 = vmatprep.subr.bf16.mxu0 %v350
    %464 = vmatpush1.bf16.msra.mxu0 %v349
    %465 = vmatprep.subr.bf16.mxu0 %v346
    %466 = vmatpush1.bf16.msra.mxu0 %v345
    %467 = vmatprep.subr.bf16.mxu0 %v342
    %468 = vmatpush1.bf16.msra.mxu0 %v341
    %469 = vmatprep.subr.bf16.mxu0 %v338
    %470 = vmatpush1.bf16.msra.mxu0 %v337
    %471 = vmatprep.subr.bf16.mxu0 0
    %472 = vmatpush2.bf16.msra.mxu0 0
    %473 = vmatprep.subr.bf16.mxu0 0
    %474 = vmatpush2.bf16.msra.mxu0 0
    %475 = vmatprep.subr.bf16.mxu0 0
    %476 = vmatpush2.bf16.msra.mxu0 0
    %477 = vmatprep.subr.bf16.mxu0 0
    %478 = vmatpush2.bf16.msra.mxu0 0
    %479 = vmatprep.subr.bf16.mxu0 %v447
    %480 = vmatpush2.bf16.msra.mxu0 %v444
    %481 = vmatprep.subr.bf16.mxu0 %v378
    %482 = vmatpush2.bf16.msra.mxu0 %v377
    %483 = vmatprep.subr.bf16.mxu0 %v374
    %484 = vmatpush2.bf16.msra.mxu0 %v373
    %485 = vmatprep.subr.bf16.mxu0 %v370
    %486 = vmatpush2.bf16.msra.mxu0 %v369
    %487 = vmatprep.mubr.bf16.mxu0 %v431
    %488 = vmatmul.mubr.bf16.gmra.mxu0 %v187
    %v489 = vpop.f32.mrf.mxu0
    %v490 = vadd.f32 %v146, %v489
    %v491 = vpop.f32.mrf.mxu0
    %v492 = vadd.f32 %v150, %v491
    %v493 = vpop.f32.mrf.mxu0
    %v494 = vadd.f32 %v146, %v493
    %v495 = vpop.f32.mrf.mxu0
    %v496 = vadd.f32 %v150, %v495
    %497 = vmatprep.mubr.bf16.mxu0 %v434
    %498 = vmatmul.mubr.bf16.gmra.mxu0 %v189
    %v499 = vpop.f32.mrf.mxu0
    %v500 = vadd.f32 %v146, %v499
    %v501 = vpop.f32.mrf.mxu0
    %v502 = vadd.f32 %v150, %v501
    %v503 = vpop.f32.mrf.mxu0
    %v504 = vadd.f32 %v146, %v503
    %v505 = vpop.f32.mrf.mxu0
    %v506 = vadd.f32 %v150, %v505
    %507 = vmatprep.mubr.bf16.mxu0 %v437
    %508 = vmatmul.mubr.bf16.gmra.mxu0 %v191
    %v509 = vpop.f32.mrf.mxu0
    %v510 = vadd.f32 %v146, %v509
    %v511 = vpop.f32.mrf.mxu0
    %v512 = vadd.f32 %v150, %v511
    %v513 = vpop.f32.mrf.mxu0
    %v514 = vadd.f32 %v146, %v513
    %v515 = vpop.f32.mrf.mxu0
    %v516 = vadd.f32 %v150, %v515
    %517 = vmatprep.mubr.bf16.mxu0 %v440
    %518 = vmatmul.mubr.bf16.gmra.mxu0 %v193
    %v519 = vpop.f32.mrf.mxu0
    %v520 = vadd.f32 %v146, %v519
    %v521 = vpop.f32.mrf.mxu0
    %v522 = vadd.f32 %v150, %v521
    %v523 = vpop.f32.mrf.mxu0
    %v524 = vadd.f32 %v146, %v523
    %v525 = vpop.f32.mrf.mxu0
    %v526 = vadd.f32 %v150, %v525
    %527 = vdwg.mxu0
    %528 = vmatprep.subr.bf16.mxu0 %v368
    %529 = vmatpush1.bf16.msra.mxu0 %v367
    %530 = vmatprep.subr.bf16.mxu0 %v364
    %531 = vmatpush1.bf16.msra.mxu0 %v363
    %532 = vmatprep.subr.bf16.mxu0 %v360
    %533 = vmatpush1.bf16.msra.mxu0 %v359
    %534 = vmatprep.subr.bf16.mxu0 %v356
    %535 = vmatpush1.bf16.msra.mxu0 %v355
    %536 = vmatprep.subr.bf16.mxu0 %v352
    %537 = vmatpush1.bf16.msra.mxu0 %v351
    %538 = vmatprep.subr.bf16.mxu0 %v348
    %539 = vmatpush1.bf16.msra.mxu0 %v347
    %540 = vmatprep.subr.bf16.mxu0 %v344
    %541 = vmatpush1.bf16.msra.mxu0 %v343
    %542 = vmatprep.subr.bf16.mxu0 %v340
    %543 = vmatpush1.bf16.msra.mxu0 %v339
    %544 = vmatprep.subr.bf16.mxu0 0
    %545 = vmatpush2.bf16.msra.mxu0 0
    %546 = vmatprep.subr.bf16.mxu0 0
    %547 = vmatpush2.bf16.msra.mxu0 0
    %548 = vmatprep.subr.bf16.mxu0 0
    %549 = vmatpush2.bf16.msra.mxu0 0
    %550 = vmatprep.subr.bf16.mxu0 0
    %551 = vmatpush2.bf16.msra.mxu0 0
    %552 = vmatprep.subr.bf16.mxu0 %v453
    %553 = vmatpush2.bf16.msra.mxu0 %v450
    %554 = vmatprep.subr.bf16.mxu0 %v380
    %555 = vmatpush2.bf16.msra.mxu0 %v379
    %556 = vmatprep.subr.bf16.mxu0 %v376
    %557 = vmatpush2.bf16.msra.mxu0 %v375
    %558 = vmatprep.subr.bf16.mxu0 %v372
    %559 = vmatpush2.bf16.msra.mxu0 %v371
    %560 = vmatprep.mubr.bf16.mxu0 %v431
    %561 = vmatmul.mubr.bf16.gmra.mxu0 %v187
    %v562 = vpop.f32.mrf.mxu0
    %v563 = vadd.f32 %v154, %v562
    %v564 = vpop.f32.mrf.mxu0
    %v565 = vadd.f32 %v158, %v564
    %v566 = vpop.f32.mrf.mxu0
    %v567 = vadd.f32 %v154, %v566
    %v568 = vpop.f32.mrf.mxu0
    %v569 = vadd.f32 %v158, %v568
    %570 = vmatprep.mubr.bf16.mxu0 %v434
    %571 = vmatmul.mubr.bf16.gmra.mxu0 %v189
    %v572 = vpop.f32.mrf.mxu0
    %v573 = vadd.f32 %v154, %v572
    %v574 = vpop.f32.mrf.mxu0
    %v575 = vadd.f32 %v158, %v574
    %v576 = vpop.f32.mrf.mxu0
    %v577 = vadd.f32 %v154, %v576
    %v578 = vpop.f32.mrf.mxu0
    %v579 = vadd.f32 %v158, %v578
    %580 = vmatprep.mubr.bf16.mxu0 %v437
    %581 = vmatmul.mubr.bf16.gmra.mxu0 %v191
    %v582 = vpop.f32.mrf.mxu0
    %v583 = vadd.f32 %v154, %v582
    %v584 = vpop.f32.mrf.mxu0
    %v585 = vadd.f32 %v158, %v584
    %v586 = vpop.f32.mrf.mxu0
    %v587 = vadd.f32 %v154, %v586
    %v588 = vpop.f32.mrf.mxu0
    %v589 = vadd.f32 %v158, %v588
    %590 = vmatprep.mubr.bf16.mxu0 %v440
    %591 = vmatmul.mubr.bf16.gmra.mxu0 %v193
    %v592 = vpop.f32.mrf.mxu0
    %v593 = vadd.f32 %v154, %v592
    %v594 = vpop.f32.mrf.mxu0
    %v595 = vadd.f32 %v158, %v594
    %v596 = vpop.f32.mrf.mxu0
    %v597 = vadd.f32 %v154, %v596
    %v598 = vpop.f32.mrf.mxu0
    %v599 = vadd.f32 %v158, %v598
    %600 = vdwg.mxu0
    %601 = vst [vmem:[#allocation2] sm:$0xff] %v490
    %602 = vst [vmem:[#allocation2 + $0x8] sm:$0xff] %v492
    %603 = vst [vmem:[#allocation2 + $0x10] sm:$0xff] %v563
    %604 = vst [vmem:[#allocation2 + $0x18] sm:$0xff] %v565
    %605 = vst [vmem:[#allocation2 + $0x20] sm:$0xff] %v494
    %606 = vst [vmem:[#allocation2 + $0x28] sm:$0xff] %v496
    %607 = vst [vmem:[#allocation2 + $0x30] sm:$0xff] %v567
    %608 = vst [vmem:[#allocation2 + $0x38] sm:$0xff] %v569
    %609 = vst [vmem:[#allocation2 + $0x40] sm:$0xff] %v500
    %610 = vst [vmem:[#allocation2 + $0x48] sm:$0xff] %v502
    %611 = vst [vmem:[#allocation2 + $0x50] sm:$0xff] %v573
    %612 = vst [vmem:[#allocation2 + $0x58] sm:$0xff] %v575
    %613 = vst [vmem:[#allocation2 + $0x60] sm:$0xff] %v504
    %614 = vst [vmem:[#allocation2 + $0x68] sm:$0xff] %v506
    %615 = vst [vmem:[#allocation2 + $0x70] sm:$0xff] %v577
    %616 = vst [vmem:[#allocation2 + $0x78] sm:$0xff] %v579
    %617 = vst [vmem:[#allocation2 + $0x80] sm:$0xff] %v510
    %618 = vst [vmem:[#allocation2 + $0x88] sm:$0xff] %v512
    %619 = vst [vmem:[#allocation2 + $0x90] sm:$0xff] %v583
    %620 = vst [vmem:[#allocation2 + $0x98] sm:$0xff] %v585
    %621 = vst [vmem:[#allocation2 + $0xa0] sm:$0xff] %v514
    %622 = vst [vmem:[#allocation2 + $0xa8] sm:$0xff] %v516
    %623 = vst [vmem:[#allocation2 + $0xb0] sm:$0xff] %v587
    %624 = vst [vmem:[#allocation2 + $0xb8] sm:$0xff] %v589
    %625 = vst [vmem:[#allocation2 + $0xc0] sm:$0xff] %v520
    %626 = vst [vmem:[#allocation2 + $0xc8] sm:$0xff] %v522
    %627 = vst [vmem:[#allocation2 + $0xd0] sm:$0xff] %v593
    %628 = vst [vmem:[#allocation2 + $0xd8] sm:$0xff] %v595
    %629 = vst [vmem:[#allocation2 + $0xe0] sm:$0xff] %v524
    %630 = vst [vmem:[#allocation2 + $0xe8] sm:$0xff] %v526
    %631 = vst [vmem:[#allocation2 + $0xf0] sm:$0xff] %v597
    %632 = vst [vmem:[#allocation2 + $0xf8] sm:$0xff] %v599
    %s633 = smul.u32 0, 4
    %s634 = smul.addr %s633, 8
    %s635 = scalar_lea.vmem [#allocation2], %s634
    %v636 = vld [vmem:[%s635] sm:$0xff]
    %v637 = vld [vmem:[%s635 + $0x8] sm:$0xff]
    %v638 = vld [vmem:[%s635 + $0x10] sm:$0xff]
    %v639 = vld [vmem:[%s635 + $0x18] sm:$0xff]
    %v640 = vld [vmem:[#allocation9] sm:$0xff]
    %v641 = vld [vmem:[#allocation9 + $0x8] sm:$0xff]
    %v642 = vld [vmem:[#allocation9 + $0x10] sm:$0xff]
    %v643 = vld [vmem:[#allocation9 + $0x18] sm:$0xff]
    %v644 = vld [vmem:[#allocation9 + $0x20] sm:$0xff]
    %v645 = vld [vmem:[#allocation9 + $0x28] sm:$0xff]
    %v646 = vld [vmem:[#allocation9 + $0x30] sm:$0xff]
    %v647 = vld [vmem:[#allocation9 + $0x38] sm:$0xff]
    %v648 = vld [vmem:[#allocation9 + $0x40] sm:$0xff]
    %v649 = vld [vmem:[#allocation9 + $0x48] sm:$0xff]
    %v650 = vld [vmem:[#allocation9 + $0x50] sm:$0xff]
    %v651 = vld [vmem:[#allocation9 + $0x58] sm:$0xff]
    %v652 = vld [vmem:[#allocation9 + $0x60] sm:$0xff]
    %v653 = vld [vmem:[#allocation9 + $0x68] sm:$0xff]
    %v654 = vld [vmem:[#allocation9 + $0x70] sm:$0xff]
    %v655 = vld [vmem:[#allocation9 + $0x78] sm:$0xff]
    %v656 = vld [vmem:[#allocation9 + $0x80] sm:$0xff]
    %v657 = vld [vmem:[#allocation9 + $0x88] sm:$0xff]
    %v658 = vld [vmem:[#allocation9 + $0x90] sm:$0xff]
    %v659 = vld [vmem:[#allocation9 + $0x98] sm:$0xff]
    %v660 = vld [vmem:[#allocation9 + $0xa0] sm:$0xff]
    %v661 = vld [vmem:[#allocation9 + $0xa8] sm:$0xff]
    %v662 = vld [vmem:[#allocation9 + $0xb0] sm:$0xff]
    %v663 = vld [vmem:[#allocation9 + $0xb8] sm:$0xff]
    %v664 = vld [vmem:[#allocation9 + $0xc0] sm:$0xff]
    %v665 = vld [vmem:[#allocation9 + $0xc8] sm:$0xff]
    %v666 = vld [vmem:[#allocation9 + $0xd0] sm:$0xff]
    %v667 = vld [vmem:[#allocation9 + $0xd8] sm:$0xff]
    %v668 = vld [vmem:[#allocation9 + $0xe0] sm:$0xff]
    %v669 = vld [vmem:[#allocation9 + $0xe8] sm:$0xff]
    %v670 = vld [vmem:[#allocation9 + $0xf0] sm:$0xff]
    %v671 = vld [vmem:[#allocation9 + $0xf8] sm:$0xff]
    %v704 = vunpack.c.l.b16 %v640
    %v705 = vunpack.c.h.b16 %v640
    %v706 = vunpack.c.l.b16 %v641
    %v707 = vunpack.c.h.b16 %v641
    %v708 = vunpack.c.l.b16 %v642
    %v709 = vunpack.c.h.b16 %v642
    %v710 = vunpack.c.l.b16 %v643
    %v711 = vunpack.c.h.b16 %v643
    %v712 = vunpack.c.l.b16 %v644
    %v713 = vunpack.c.h.b16 %v644
    %v714 = vunpack.c.l.b16 %v645
    %v715 = vunpack.c.h.b16 %v645
    %v716 = vunpack.c.l.b16 %v646
    %v717 = vunpack.c.h.b16 %v646
    %v718 = vunpack.c.l.b16 %v647
    %v719 = vunpack.c.h.b16 %v647
    %v720 = vunpack.c.l.b16 %v648
    %v721 = vunpack.c.h.b16 %v648
    %v722 = vunpack.c.l.b16 %v649
    %v723 = vunpack.c.h.b16 %v649
    %v724 = vunpack.c.l.b16 %v650
    %v725 = vunpack.c.h.b16 %v650
    %v726 = vunpack.c.l.b16 %v651
    %v727 = vunpack.c.h.b16 %v651
    %v728 = vunpack.c.l.b16 %v652
    %v729 = vunpack.c.h.b16 %v652
    %v730 = vunpack.c.l.b16 %v653
    %v731 = vunpack.c.h.b16 %v653
    %v732 = vunpack.c.l.b16 %v654
    %v733 = vunpack.c.h.b16 %v654
    %v734 = vunpack.c.l.b16 %v655
    %v735 = vunpack.c.h.b16 %v655
    %v736 = vunpack.c.l.b16 %v656
    %v737 = vunpack.c.h.b16 %v656
    %v738 = vunpack.c.l.b16 %v657
    %v739 = vunpack.c.h.b16 %v657
    %v740 = vunpack.c.l.b16 %v658
    %v741 = vunpack.c.h.b16 %v658
    %v742 = vunpack.c.l.b16 %v659
    %v743 = vunpack.c.h.b16 %v659
    %v744 = vunpack.c.l.b16 %v660
    %v745 = vunpack.c.h.b16 %v660
    %v746 = vunpack.c.l.b16 %v661
    %v747 = vunpack.c.h.b16 %v661
    %v748 = vunpack.c.l.b16 %v662
    %v749 = vunpack.c.h.b16 %v662
    %v750 = vunpack.c.l.b16 %v663
    %v751 = vunpack.c.h.b16 %v663
    %v752 = vunpack.c.l.b16 %v664
    %v753 = vunpack.c.h.b16 %v664
    %v754 = vunpack.c.l.b16 %v665
    %v755 = vunpack.c.h.b16 %v665
    %v756 = vunpack.c.l.b16 %v666
    %v757 = vunpack.c.h.b16 %v666
    %v758 = vunpack.c.l.b16 %v667
    %v759 = vunpack.c.h.b16 %v667
    %v760 = vunpack.c.l.b16 %v668
    %v761 = vunpack.c.h.b16 %v668
    %v762 = vunpack.c.l.b16 %v669
    %v763 = vunpack.c.h.b16 %v669
    %v764 = vunpack.c.l.b16 %v670
    %v765 = vunpack.c.h.b16 %v670
    %v766 = vunpack.c.l.b16 %v671
    %v767 = vunpack.c.h.b16 %v671
    %v768 = vpack.c.b16 %v708, %v704
    %v769 = vpack.c.b16 %v709, %v705
    %v770 = vpack.c.b16 %v710, %v706
    %v771 = vpack.c.b16 %v711, %v707
    %v772 = vpack.c.b16 %v716, %v712
    %v773 = vpack.c.b16 %v717, %v713
    %v774 = vpack.c.b16 %v718, %v714
    %v775 = vpack.c.b16 %v719, %v715
    %v776 = vpack.c.b16 %v724, %v720
    %v777 = vpack.c.b16 %v725, %v721
    %v778 = vpack.c.b16 %v726, %v722
    %v779 = vpack.c.b16 %v727, %v723
    %v780 = vpack.c.b16 %v732, %v728
    %v781 = vpack.c.b16 %v733, %v729
    %v782 = vpack.c.b16 %v734, %v730
    %v783 = vpack.c.b16 %v735, %v731
    %v784 = vpack.c.b16 %v740, %v736
    %v785 = vpack.c.b16 %v741, %v737
    %v786 = vpack.c.b16 %v742, %v738
    %v787 = vpack.c.b16 %v743, %v739
    %v788 = vpack.c.b16 %v748, %v744
    %v789 = vpack.c.b16 %v749, %v745
    %v790 = vpack.c.b16 %v750, %v746
    %v791 = vpack.c.b16 %v751, %v747
    %v792 = vpack.c.b16 %v756, %v752
    %v793 = vpack.c.b16 %v757, %v753
    %v794 = vpack.c.b16 %v758, %v754
    %v795 = vpack.c.b16 %v759, %v755
    %v796 = vpack.c.b16 %v764, %v760
    %v797 = vpack.c.b16 %v765, %v761
    %v798 = vpack.c.b16 %v766, %v762
    %v799 = vpack.c.b16 %v767, %v763
    %832 = vmatprep.subr.bf16.mxu0 %v797
    %833 = vmatpush1.bf16.msra.mxu0 %v796
    %834 = vmatprep.subr.bf16.mxu0 %v793
    %835 = vmatpush1.bf16.msra.mxu0 %v792
    %836 = vmatprep.subr.bf16.mxu0 %v789
    %837 = vmatpush1.bf16.msra.mxu0 %v788
    %838 = vmatprep.subr.bf16.mxu0 %v785
    %839 = vmatpush1.bf16.msra.mxu0 %v784
    %840 = vmatprep.subr.bf16.mxu0 %v781
    %841 = vmatpush1.bf16.msra.mxu0 %v780
    %842 = vmatprep.subr.bf16.mxu0 %v777
    %843 = vmatpush1.bf16.msra.mxu0 %v776
    %844 = vmatprep.subr.bf16.mxu0 %v773
    %845 = vmatpush1.bf16.msra.mxu0 %v772
    %846 = vmatprep.subr.bf16.mxu0 %v769
    %847 = vmatpush1.bf16.msra.mxu0 %v768
    %848 = vmatprep.subr.bf16.mxu0 0
    %849 = vmatpush2.bf16.msra.mxu0 0
    %850 = vmatprep.subr.bf16.mxu0 0
    %851 = vmatpush2.bf16.msra.mxu0 0
    %852 = vmatprep.subr.bf16.mxu0 0
    %853 = vmatpush2.bf16.msra.mxu0 0
    %854 = vmatprep.subr.bf16.mxu0 0
    %855 = vmatpush2.bf16.msra.mxu0 0
    %856 = vmatprep.subr.bf16.mxu0 0
    %857 = vmatpush2.bf16.msra.mxu0 0
    %858 = vmatprep.subr.bf16.mxu0 0
    %859 = vmatpush2.bf16.msra.mxu0 0
    %860 = vmatprep.subr.bf16.mxu0 0
    %861 = vmatpush2.bf16.msra.mxu0 0
    %862 = vmatprep.subr.bf16.mxu0 0
    %863 = vmatpush2.bf16.msra.mxu0 0
    %864 = vmatprep.mubr.bf16.mxu0 0
    %865 = vmatmul.mubr.bf16.gmra.mxu0 0
    %v866 = vpop.f32.mrf.mxu0
    %v867 = vadd.f32 %v636, %v866
    %v868 = vpop.f32.mrf.mxu0
    %v869 = vadd.f32 %v637, %v868
    %v870 = vpop.f32.mrf.mxu0
    %v871 = vpop.f32.mrf.mxu0
    %872 = vdwg.mxu0
    %873 = vmatprep.subr.bf16.mxu0 %v799
    %874 = vmatpush1.bf16.msra.mxu0 %v798
    %875 = vmatprep.subr.bf16.mxu0 %v795
    %876 = vmatpush1.bf16.msra.mxu0 %v794
    %877 = vmatprep.subr.bf16.mxu0 %v791
    %878 = vmatpush1.bf16.msra.mxu0 %v790
    %879 = vmatprep.subr.bf16.mxu0 %v787
    %880 = vmatpush1.bf16.msra.mxu0 %v786
    %881 = vmatprep.subr.bf16.mxu0 %v783
    %882 = vmatpush1.bf16.msra.mxu0 %v782
    %883 = vmatprep.subr.bf16.mxu0 %v779
    %884 = vmatpush1.bf16.msra.mxu0 %v778
    %885 = vmatprep.subr.bf16.mxu0 %v775
    %886 = vmatpush1.bf16.msra.mxu0 %v774
    %887 = vmatprep.subr.bf16.mxu0 %v771
    %888 = vmatpush1.bf16.msra.mxu0 %v770
    %889 = vmatprep.subr.bf16.mxu0 0
    %890 = vmatpush2.bf16.msra.mxu0 0
    %891 = vmatprep.subr.bf16.mxu0 0
    %892 = vmatpush2.bf16.msra.mxu0 0
    %893 = vmatprep.subr.bf16.mxu0 0
    %894 = vmatpush2.bf16.msra.mxu0 0
    %895 = vmatprep.subr.bf16.mxu0 0
    %896 = vmatpush2.bf16.msra.mxu0 0
    %897 = vmatprep.subr.bf16.mxu0 0
    %898 = vmatpush2.bf16.msra.mxu0 0
    %899 = vmatprep.subr.bf16.mxu0 0
    %900 = vmatpush2.bf16.msra.mxu0 0
    %901 = vmatprep.subr.bf16.mxu0 0
    %902 = vmatpush2.bf16.msra.mxu0 0
    %903 = vmatprep.subr.bf16.mxu0 0
    %904 = vmatpush2.bf16.msra.mxu0 0
    %905 = vmatprep.mubr.bf16.mxu0 0
    %906 = vmatmul.mubr.bf16.gmra.mxu0 0
    %v907 = vpop.f32.mrf.mxu0
    %v908 = vadd.f32 %v638, %v907
    %v909 = vpop.f32.mrf.mxu0
    %v910 = vadd.f32 %v639, %v909
    %v911 = vpop.f32.mrf.mxu0
    %v912 = vpop.f32.mrf.mxu0
    %913 = vdwg.mxu0
    %v914 = vxor.u32 %v867, 2147483648
    %v915 = vxor.u32 %v869, 2147483648
    %v916 = vxor.u32 %v908, 2147483648
    %v917 = vmul.f32 %v914, 1.442695
    %v918 = vpow.pop %v917
    %v919 = vmul.f32 %v915, 1.442695
    %v920 = vpow.pop %v919
    %v921 = vmul.f32 %v916, 1.442695
    %v922 = vpow.pop %v921
    %v923 = vadd.f32 %v918, 1.0
    %v924 = vadd.f32 %v920, 1.0
    %v925 = vadd.f32 %v922, 1.0
    %v926 = vrcp.pop %v923
    %v927 = vmul.f32 1.0, %v926
    %v928 = vrcp.pop %v924
    %v929 = vmul.f32 1.0, %v928
    %v930 = vrcp.pop %v925
    %v931 = vmul.f32 1.0, %v930
    %v932 = vtanh.pop %v910
    %v933 = vmul.f32 %v929, 0.0
    %v934 = vmul.f32 %v927, %v932
    %v935 = vadd.f32 %v933, %v934
    %v936 = vtanh.pop %v935
    %v937 = vmul.f32 %v931, %v936
    %s938 = smul.u32 1, 4
    %s939 = smul.addr %s938, 8
    %s940 = scalar_lea.vmem [#allocation2], %s939
    %v941 = vld [vmem:[%s940] sm:$0xff]
    %v942 = vld [vmem:[%s940 + $0x8] sm:$0xff]
    %v943 = vld [vmem:[%s940 + $0x10] sm:$0xff]
    %v944 = vld [vmem:[%s940 + $0x18] sm:$0xff]
    %v945 = vpack.c.bf16 %v937, %v937
    %946 = vmatprep.subr.bf16.mxu0 %v797
    %947 = vmatpush1.bf16.msra.mxu0 %v796
    %948 = vmatprep.subr.bf16.mxu0 %v793
    %949 = vmatpush1.bf16.msra.mxu0 %v792
    %950 = vmatprep.subr.bf16.mxu0 %v789
    %951 = vmatpush1.bf16.msra.mxu0 %v788
    %952 = vmatprep.subr.bf16.mxu0 %v785
    %953 = vmatpush1.bf16.msra.mxu0 %v784
    %954 = vmatprep.subr.bf16.mxu0 %v781
    %955 = vmatpush1.bf16.msra.mxu0 %v780
    %956 = vmatprep.subr.bf16.mxu0 %v777
    %957 = vmatpush1.bf16.msra.mxu0 %v776
    %958 = vmatprep.subr.bf16.mxu0 %v773
    %959 = vmatpush1.bf16.msra.mxu0 %v772
    %960 = vmatprep.subr.bf16.mxu0 %v769
    %961 = vmatpush1.bf16.msra.mxu0 %v768
    %962 = vmatprep.subr.bf16.mxu0 0
    %963 = vmatpush2.bf16.msra.mxu0 0
    %964 = vmatprep.subr.bf16.mxu0 0
    %965 = vmatpush2.bf16.msra.mxu0 0
    %966 = vmatprep.subr.bf16.mxu0 0
    %967 = vmatpush2.bf16.msra.mxu0 0
    %968 = vmatprep.subr.bf16.mxu0 0
    %969 = vmatpush2.bf16.msra.mxu0 0
    %970 = vmatprep.subr.bf16.mxu0 0
    %971 = vmatpush2.bf16.msra.mxu0 0
    %972 = vmatprep.subr.bf16.mxu0 0
    %973 = vmatpush2.bf16.msra.mxu0 0
    %974 = vmatprep.subr.bf16.mxu0 0
    %975 = vmatpush2.bf16.msra.mxu0 0
    %976 = vmatprep.subr.bf16.mxu0 0
    %977 = vmatpush2.bf16.msra.mxu0 0
    %978 = vmatprep.mubr.bf16.mxu0 0
    %979 = vmatmul.mubr.bf16.gmra.mxu0 %v945
    %v980 = vpop.f32.mrf.mxu0
    %v981 = vadd.f32 %v941, %v980
    %v982 = vpop.f32.mrf.mxu0
    %v983 = vadd.f32 %v942, %v982
    %v984 = vpop.f32.mrf.mxu0
    %v985 = vpop.f32.mrf.mxu0
    %986 = vdwg.mxu0
    %987 = vmatprep.subr.bf16.mxu0 %v799
    %988 = vmatpush1.bf16.msra.mxu0 %v798
    %989 = vmatprep.subr.bf16.mxu0 %v795
    %990 = vmatpush1.bf16.msra.mxu0 %v794
    %991 = vmatprep.subr.bf16.mxu0 %v791
    %992 = vmatpush1.bf16.msra.mxu0 %v790
    %993 = vmatprep.subr.bf16.mxu0 %v787
    %994 = vmatpush1.bf16.msra.mxu0 %v786
    %995 = vmatprep.subr.bf16.mxu0 %v783
    %996 = vmatpush1.bf16.msra.mxu0 %v782
    %997 = vmatprep.subr.bf16.mxu0 %v779
    %998 = vmatpush1.bf16.msra.mxu0 %v778
    %999 = vmatprep.subr.bf16.mxu0 %v775
    %1000 = vmatpush1.bf16.msra.mxu0 %v774
    %1001 = vmatprep.subr.bf16.mxu0 %v771
    %1002 = vmatpush1.bf16.msra.mxu0 %v770
    %1003 = vmatprep.subr.bf16.mxu0 0
    %1004 = vmatpush2.bf16.msra.mxu0 0
    %1005 = vmatprep.subr.bf16.mxu0 0
    %1006 = vmatpush2.bf16.msra.mxu0 0
    %1007 = vmatprep.subr.bf16.mxu0 0
    %1008 = vmatpush2.bf16.msra.mxu0 0
    %1009 = vmatprep.subr.bf16.mxu0 0
    %1010 = vmatpush2.bf16.msra.mxu0 0
    %1011 = vmatprep.subr.bf16.mxu0 0
    %1012 = vmatpush2.bf16.msra.mxu0 0
    %1013 = vmatprep.subr.bf16.mxu0 0
    %1014 = vmatpush2.bf16.msra.mxu0 0
    %1015 = vmatprep.subr.bf16.mxu0 0
    %1016 = vmatpush2.bf16.msra.mxu0 0
    %1017 = vmatprep.subr.bf16.mxu0 0
    %1018 = vmatpush2.bf16.msra.mxu0 0
    %1019 = vmatprep.mubr.bf16.mxu0 0
    %1020 = vmatmul.mubr.bf16.gmra.mxu0 %v945
    %v1021 = vpop.f32.mrf.mxu0
    %v1022 = vadd.f32 %v943, %v1021
    %v1023 = vpop.f32.mrf.mxu0
    %v1024 = vadd.f32 %v944, %v1023
    %v1025 = vpop.f32.mrf.mxu0
    %v1026 = vpop.f32.mrf.mxu0
    %1027 = vdwg.mxu0
    %v1028 = vxor.u32 %v981, 2147483648
    %v1029 = vxor.u32 %v983, 2147483648
    %v1030 = vxor.u32 %v1022, 2147483648
    %v1031 = vmul.f32 %v1028, 1.442695
    %v1032 = vpow.pop %v1031
    %v1033 = vmul.f32 %v1029, 1.442695
    %v1034 = vpow.pop %v1033
    %v1035 = vmul.f32 %v1030, 1.442695
    %v1036 = vpow.pop %v1035
    %v1037 = vadd.f32 %v1032, 1.0
    %v1038 = vadd.f32 %v1034, 1.0
    %v1039 = vadd.f32 %v1036, 1.0
    %v1040 = vrcp.pop %v1037
    %v1041 = vmul.f32 1.0, %v1040
    %v1042 = vrcp.pop %v1038
    %v1043 = vmul.f32 1.0, %v1042
    %v1044 = vrcp.pop %v1039
    %v1045 = vmul.f32 1.0, %v1044
    %v1046 = vtanh.pop %v1024
    %v1047 = vmul.f32 %v1043, %v935
    %v1048 = vmul.f32 %v1041, %v1046
    %v1049 = vadd.f32 %v1047, %v1048
    %v1050 = vtanh.pop %v1049
    %v1051 = vmul.f32 %v1045, %v1050
    %s1052 = smul.u32 2, 4
    %s1053 = smul.addr %s1052, 8
    %s1054 = scalar_lea.vmem [#allocation2], %s1053
    %v1055 = vld [vmem:[%s1054] sm:$0xff]
    %v1056 = vld [vmem:[%s1054 + $0x8] sm:$0xff]
    %v1057 = vld [vmem:[%s1054 + $0x10] sm:$0xff]
    %v1058 = vld [vmem:[%s1054 + $0x18] sm:$0xff]
    %v1059 = vpack.c.bf16 %v1051, %v1051
    %1060 = vmatprep.subr.bf16.mxu0 %v797
    %1061 = vmatpush1.bf16.msra.mxu0 %v796
    %1062 = vmatprep.subr.bf16.mxu0 %v793
    %1063 = vmatpush1.bf16.msra.mxu0 %v792
    %1064 = vmatprep.subr.bf16.mxu0 %v789
    %1065 = vmatpush1.bf16.msra.mxu0 %v788
    %1066 = vmatprep.subr.bf16.mxu0 %v785
    %1067 = vmatpush1.bf16.msra.mxu0 %v784
    %1068 = vmatprep.subr.bf16.mxu0 %v781
    %1069 = vmatpush1.bf16.msra.mxu0 %v780
    %1070 = vmatprep.subr.bf16.mxu0 %v777
    %1071 = vmatpush1.bf16.msra.mxu0 %v776
    %1072 = vmatprep.subr.bf16.mxu0 %v773
    %1073 = vmatpush1.bf16.msra.mxu0 %v772
    %1074 = vmatprep.subr.bf16.mxu0 %v769
    %1075 = vmatpush1.bf16.msra.mxu0 %v768
    %1076 = vmatprep.subr.bf16.mxu0 0
    %1077 = vmatpush2.bf16.msra.mxu0 0
    %1078 = vmatprep.subr.bf16.mxu0 0
    %1079 = vmatpush2.bf16.msra.mxu0 0
    %1080 = vmatprep.subr.bf16.mxu0 0
    %1081 = vmatpush2.bf16.msra.mxu0 0
    %1082 = vmatprep.subr.bf16.mxu0 0
    %1083 = vmatpush2.bf16.msra.mxu0 0
    %1084 = vmatprep.subr.bf16.mxu0 0
    %1085 = vmatpush2.bf16.msra.mxu0 0
    %1086 = vmatprep.subr.bf16.mxu0 0
    %1087 = vmatpush2.bf16.msra.mxu0 0
    %1088 = vmatprep.subr.bf16.mxu0 0
    %1089 = vmatpush2.bf16.msra.mxu0 0
    %1090 = vmatprep.subr.bf16.mxu0 0
    %1091 = vmatpush2.bf16.msra.mxu0 0
    %1092 = vmatprep.mubr.bf16.mxu0 0
    %1093 = vmatmul.mubr.bf16.gmra.mxu0 %v1059
    %v1094 = vpop.f32.mrf.mxu0
    %v1095 = vadd.f32 %v1055, %v1094
    %v1096 = vpop.f32.mrf.mxu0
    %v1097 = vadd.f32 %v1056, %v1096
    %v1098 = vpop.f32.mrf.mxu0
    %v1099 = vpop.f32.mrf.mxu0
    %1100 = vdwg.mxu0
    %1101 = vmatprep.subr.bf16.mxu0 %v799
    %1102 = vmatpush1.bf16.msra.mxu0 %v798
    %1103 = vmatprep.subr.bf16.mxu0 %v795
    %1104 = vmatpush1.bf16.msra.mxu0 %v794
    %1105 = vmatprep.subr.bf16.mxu0 %v791
    %1106 = vmatpush1.bf16.msra.mxu0 %v790
    %1107 = vmatprep.subr.bf16.mxu0 %v787
    %1108 = vmatpush1.bf16.msra.mxu0 %v786
    %1109 = vmatprep.subr.bf16.mxu0 %v783
    %1110 = vmatpush1.bf16.msra.mxu0 %v782
    %1111 = vmatprep.subr.bf16.mxu0 %v779
    %1112 = vmatpush1.bf16.msra.mxu0 %v778
    %1113 = vmatprep.subr.bf16.mxu0 %v775
    %1114 = vmatpush1.bf16.msra.mxu0 %v774
    %1115 = vmatprep.subr.bf16.mxu0 %v771
    %1116 = vmatpush1.bf16.msra.mxu0 %v770
    %1117 = vmatprep.subr.bf16.mxu0 0
    %1118 = vmatpush2.bf16.msra.mxu0 0
    %1119 = vmatprep.subr.bf16.mxu0 0
    %1120 = vmatpush2.bf16.msra.mxu0 0
    %1121 = vmatprep.subr.bf16.mxu0 0
    %1122 = vmatpush2.bf16.msra.mxu0 0
    %1123 = vmatprep.subr.bf16.mxu0 0
    %1124 = vmatpush2.bf16.msra.mxu0 0
    %1125 = vmatprep.subr.bf16.mxu0 0
    %1126 = vmatpush2.bf16.msra.mxu0 0
    %1127 = vmatprep.subr.bf16.mxu0 0
    %1128 = vmatpush2.bf16.msra.mxu0 0
    %1129 = vmatprep.subr.bf16.mxu0 0
    %1130 = vmatpush2.bf16.msra.mxu0 0
    %1131 = vmatprep.subr.bf16.mxu0 0
    %1132 = vmatpush2.bf16.msra.mxu0 0
    %1133 = vmatprep.mubr.bf16.mxu0 0
    %1134 = vmatmul.mubr.bf16.gmra.mxu0 %v1059
    %v1135 = vpop.f32.mrf.mxu0
    %v1136 = vadd.f32 %v1057, %v1135
    %v1137 = vpop.f32.mrf.mxu0
    %v1138 = vadd.f32 %v1058, %v1137
    %v1139 = vpop.f32.mrf.mxu0
    %v1140 = vpop.f32.mrf.mxu0
    %1141 = vdwg.mxu0
    %v1142 = vxor.u32 %v1095, 2147483648
    %v1143 = vxor.u32 %v1097, 2147483648
    %v1144 = vxor.u32 %v1136, 2147483648
    %v1145 = vmul.f32 %v1142, 1.442695
    %v1146 = vpow.pop %v1145
    %v1147 = vmul.f32 %v1143, 1.442695
    %v1148 = vpow.pop %v1147
    %v1149 = vmul.f32 %v1144, 1.442695
    %v1150 = vpow.pop %v1149
    %v1151 = vadd.f32 %v1146, 1.0
    %v1152 = vadd.f32 %v1148, 1.0
    %v1153 = vadd.f32 %v1150, 1.0
    %v1154 = vrcp.pop %v1151
    %v1155 = vmul.f32 1.0, %v1154
    %v1156 = vrcp.pop %v1152
    %v1157 = vmul.f32 1.0, %v1156
    %v1158 = vrcp.pop %v1153
    %v1159 = vmul.f32 1.0, %v1158
    %v1160 = vtanh.pop %v1138
    %v1161 = vmul.f32 %v1157, %v1049
    %v1162 = vmul.f32 %v1155, %v1160
    %v1163 = vadd.f32 %v1161, %v1162
    %v1164 = vtanh.pop %v1163
    %v1165 = vmul.f32 %v1159, %v1164
    %s1166 = smul.u32 3, 4
    %s1167 = smul.addr %s1166, 8
    %s1168 = scalar_lea.vmem [#allocation2], %s1167
    %v1169 = vld [vmem:[%s1168] sm:$0xff]
    %v1170 = vld [vmem:[%s1168 + $0x8] sm:$0xff]
    %v1171 = vld [vmem:[%s1168 + $0x10] sm:$0xff]
    %v1172 = vld [vmem:[%s1168 + $0x18] sm:$0xff]
    %v1173 = vpack.c.bf16 %v1165, %v1165
    %1174 = vmatprep.subr.bf16.mxu0 %v797
    %1175 = vmatpush1.bf16.msra.mxu0 %v796
    %1176 = vmatprep.subr.bf16.mxu0 %v793
    %1177 = vmatpush1.bf16.msra.mxu0 %v792
    %1178 = vmatprep.subr.bf16.mxu0 %v789
    %1179 = vmatpush1.bf16.msra.mxu0 %v788
    %1180 = vmatprep.subr.bf16.mxu0 %v785
    %1181 = vmatpush1.bf16.msra.mxu0 %v784
    %1182 = vmatprep.subr.bf16.mxu0 %v781
    %1183 = vmatpush1.bf16.msra.mxu0 %v780
    %1184 = vmatprep.subr.bf16.mxu0 %v777
    %1185 = vmatpush1.bf16.msra.mxu0 %v776
    %1186 = vmatprep.subr.bf16.mxu0 %v773
    %1187 = vmatpush1.bf16.msra.mxu0 %v772
    %1188 = vmatprep.subr.bf16.mxu0 %v769
    %1189 = vmatpush1.bf16.msra.mxu0 %v768
    %1190 = vmatprep.subr.bf16.mxu0 0
    %1191 = vmatpush2.bf16.msra.mxu0 0
    %1192 = vmatprep.subr.bf16.mxu0 0
    %1193 = vmatpush2.bf16.msra.mxu0 0
    %1194 = vmatprep.subr.bf16.mxu0 0
    %1195 = vmatpush2.bf16.msra.mxu0 0
    %1196 = vmatprep.subr.bf16.mxu0 0
    %1197 = vmatpush2.bf16.msra.mxu0 0
    %1198 = vmatprep.subr.bf16.mxu0 0
    %1199 = vmatpush2.bf16.msra.mxu0 0
    %1200 = vmatprep.subr.bf16.mxu0 0
    %1201 = vmatpush2.bf16.msra.mxu0 0
    %1202 = vmatprep.subr.bf16.mxu0 0
    %1203 = vmatpush2.bf16.msra.mxu0 0
    %1204 = vmatprep.subr.bf16.mxu0 0
    %1205 = vmatpush2.bf16.msra.mxu0 0
    %1206 = vmatprep.mubr.bf16.mxu0 0
    %1207 = vmatmul.mubr.bf16.gmra.mxu0 %v1173
    %v1208 = vpop.f32.mrf.mxu0
    %v1209 = vadd.f32 %v1169, %v1208
    %v1210 = vpop.f32.mrf.mxu0
    %v1211 = vadd.f32 %v1170, %v1210
    %v1212 = vpop.f32.mrf.mxu0
    %v1213 = vpop.f32.mrf.mxu0
    %1214 = vdwg.mxu0
    %1215 = vmatprep.subr.bf16.mxu0 %v799
    %1216 = vmatpush1.bf16.msra.mxu0 %v798
    %1217 = vmatprep.subr.bf16.mxu0 %v795
    %1218 = vmatpush1.bf16.msra.mxu0 %v794
    %1219 = vmatprep.subr.bf16.mxu0 %v791
    %1220 = vmatpush1.bf16.msra.mxu0 %v790
    %1221 = vmatprep.subr.bf16.mxu0 %v787
    %1222 = vmatpush1.bf16.msra.mxu0 %v786
    %1223 = vmatprep.subr.bf16.mxu0 %v783
    %1224 = vmatpush1.bf16.msra.mxu0 %v782
    %1225 = vmatprep.subr.bf16.mxu0 %v779
    %1226 = vmatpush1.bf16.msra.mxu0 %v778
    %1227 = vmatprep.subr.bf16.mxu0 %v775
    %1228 = vmatpush1.bf16.msra.mxu0 %v774
    %1229 = vmatprep.subr.bf16.mxu0 %v771
    %1230 = vmatpush1.bf16.msra.mxu0 %v770
    %1231 = vmatprep.subr.bf16.mxu0 0
    %1232 = vmatpush2.bf16.msra.mxu0 0
    %1233 = vmatprep.subr.bf16.mxu0 0
    %1234 = vmatpush2.bf16.msra.mxu0 0
    %1235 = vmatprep.subr.bf16.mxu0 0
    %1236 = vmatpush2.bf16.msra.mxu0 0
    %1237 = vmatprep.subr.bf16.mxu0 0
    %1238 = vmatpush2.bf16.msra.mxu0 0
    %1239 = vmatprep.subr.bf16.mxu0 0
    %1240 = vmatpush2.bf16.msra.mxu0 0
    %1241 = vmatprep.subr.bf16.mxu0 0
    %1242 = vmatpush2.bf16.msra.mxu0 0
    %1243 = vmatprep.subr.bf16.mxu0 0
    %1244 = vmatpush2.bf16.msra.mxu0 0
    %1245 = vmatprep.subr.bf16.mxu0 0
    %1246 = vmatpush2.bf16.msra.mxu0 0
    %1247 = vmatprep.mubr.bf16.mxu0 0
    %1248 = vmatmul.mubr.bf16.gmra.mxu0 %v1173
    %v1249 = vpop.f32.mrf.mxu0
    %v1250 = vadd.f32 %v1171, %v1249
    %v1251 = vpop.f32.mrf.mxu0
    %v1252 = vadd.f32 %v1172, %v1251
    %v1253 = vpop.f32.mrf.mxu0
    %v1254 = vpop.f32.mrf.mxu0
    %1255 = vdwg.mxu0
    %v1256 = vxor.u32 %v1209, 2147483648
    %v1257 = vxor.u32 %v1211, 2147483648
    %v1258 = vxor.u32 %v1250, 2147483648
    %v1259 = vmul.f32 %v1256, 1.442695
    %v1260 = vpow.pop %v1259
    %v1261 = vmul.f32 %v1257, 1.442695
    %v1262 = vpow.pop %v1261
    %v1263 = vmul.f32 %v1258, 1.442695
    %v1264 = vpow.pop %v1263
    %v1265 = vadd.f32 %v1260, 1.0
    %v1266 = vadd.f32 %v1262, 1.0
    %v1267 = vadd.f32 %v1264, 1.0
    %v1268 = vrcp.pop %v1265
    %v1269 = vmul.f32 1.0, %v1268
    %v1270 = vrcp.pop %v1266
    %v1271 = vmul.f32 1.0, %v1270
    %v1272 = vrcp.pop %v1267
    %v1273 = vmul.f32 1.0, %v1272
    %v1274 = vtanh.pop %v1252
    %v1275 = vmul.f32 %v1271, %v1163
    %v1276 = vmul.f32 %v1269, %v1274
    %v1277 = vadd.f32 %v1275, %v1276
    %v1278 = vtanh.pop %v1277
    %v1279 = vmul.f32 %v1273, %v1278
    %s1280 = smul.u32 4, 4
    %s1281 = smul.addr %s1280, 8
    %s1282 = scalar_lea.vmem [#allocation2], %s1281
    %v1283 = vld [vmem:[%s1282] sm:$0xff]
    %v1284 = vld [vmem:[%s1282 + $0x8] sm:$0xff]
    %v1285 = vld [vmem:[%s1282 + $0x10] sm:$0xff]
    %v1286 = vld [vmem:[%s1282 + $0x18] sm:$0xff]
    %v1287 = vpack.c.bf16 %v1279, %v1279
    %1288 = vmatprep.subr.bf16.mxu0 %v797
    %1289 = vmatpush1.bf16.msra.mxu0 %v796
    %1290 = vmatprep.subr.bf16.mxu0 %v793
    %1291 = vmatpush1.bf16.msra.mxu0 %v792
    %1292 = vmatprep.subr.bf16.mxu0 %v789
    %1293 = vmatpush1.bf16.msra.mxu0 %v788
    %1294 = vmatprep.subr.bf16.mxu0 %v785
    %1295 = vmatpush1.bf16.msra.mxu0 %v784
    %1296 = vmatprep.subr.bf16.mxu0 %v781
    %1297 = vmatpush1.bf16.msra.mxu0 %v780
    %1298 = vmatprep.subr.bf16.mxu0 %v777
    %1299 = vmatpush1.bf16.msra.mxu0 %v776
    %1300 = vmatprep.subr.bf16.mxu0 %v773
    %1301 = vmatpush1.bf16.msra.mxu0 %v772
    %1302 = vmatprep.subr.bf16.mxu0 %v769
    %1303 = vmatpush1.bf16.msra.mxu0 %v768
    %1304 = vmatprep.subr.bf16.mxu0 0
    %1305 = vmatpush2.bf16.msra.mxu0 0
    %1306 = vmatprep.subr.bf16.mxu0 0
    %1307 = vmatpush2.bf16.msra.mxu0 0
    %1308 = vmatprep.subr.bf16.mxu0 0
    %1309 = vmatpush2.bf16.msra.mxu0 0
    %1310 = vmatprep.subr.bf16.mxu0 0
    %1311 = vmatpush2.bf16.msra.mxu0 0
    %1312 = vmatprep.subr.bf16.mxu0 0
    %1313 = vmatpush2.bf16.msra.mxu0 0
    %1314 = vmatprep.subr.bf16.mxu0 0
    %1315 = vmatpush2.bf16.msra.mxu0 0
    %1316 = vmatprep.subr.bf16.mxu0 0
    %1317 = vmatpush2.bf16.msra.mxu0 0
    %1318 = vmatprep.subr.bf16.mxu0 0
    %1319 = vmatpush2.bf16.msra.mxu0 0
    %1320 = vmatprep.mubr.bf16.mxu0 0
    %1321 = vmatmul.mubr.bf16.gmra.mxu0 %v1287
    %v1322 = vpop.f32.mrf.mxu0
    %v1323 = vadd.f32 %v1283, %v1322
    %v1324 = vpop.f32.mrf.mxu0
    %v1325 = vadd.f32 %v1284, %v1324
    %v1326 = vpop.f32.mrf.mxu0
    %v1327 = vpop.f32.mrf.mxu0
    %1328 = vdwg.mxu0
    %1329 = vmatprep.subr.bf16.mxu0 %v799
    %1330 = vmatpush1.bf16.msra.mxu0 %v798
    %1331 = vmatprep.subr.bf16.mxu0 %v795
    %1332 = vmatpush1.bf16.msra.mxu0 %v794
    %1333 = vmatprep.subr.bf16.mxu0 %v791
    %1334 = vmatpush1.bf16.msra.mxu0 %v790
    %1335 = vmatprep.subr.bf16.mxu0 %v787
    %1336 = vmatpush1.bf16.msra.mxu0 %v786
    %1337 = vmatprep.subr.bf16.mxu0 %v783
    %1338 = vmatpush1.bf16.msra.mxu0 %v782
    %1339 = vmatprep.subr.bf16.mxu0 %v779
    %1340 = vmatpush1.bf16.msra.mxu0 %v778
    %1341 = vmatprep.subr.bf16.mxu0 %v775
    %1342 = vmatpush1.bf16.msra.mxu0 %v774
    %1343 = vmatprep.subr.bf16.mxu0 %v771
    %1344 = vmatpush1.bf16.msra.mxu0 %v770
    %1345 = vmatprep.subr.bf16.mxu0 0
    %1346 = vmatpush2.bf16.msra.mxu0 0
    %1347 = vmatprep.subr.bf16.mxu0 0
    %1348 = vmatpush2.bf16.msra.mxu0 0
    %1349 = vmatprep.subr.bf16.mxu0 0
    %1350 = vmatpush2.bf16.msra.mxu0 0
    %1351 = vmatprep.subr.bf16.mxu0 0
    %1352 = vmatpush2.bf16.msra.mxu0 0
    %1353 = vmatprep.subr.bf16.mxu0 0
    %1354 = vmatpush2.bf16.msra.mxu0 0
    %1355 = vmatprep.subr.bf16.mxu0 0
    %1356 = vmatpush2.bf16.msra.mxu0 0
    %1357 = vmatprep.subr.bf16.mxu0 0
    %1358 = vmatpush2.bf16.msra.mxu0 0
    %1359 = vmatprep.subr.bf16.mxu0 0
    %1360 = vmatpush2.bf16.msra.mxu0 0
    %1361 = vmatprep.mubr.bf16.mxu0 0
    %1362 = vmatmul.mubr.bf16.gmra.mxu0 %v1287
    %v1363 = vpop.f32.mrf.mxu0
    %v1364 = vadd.f32 %v1285, %v1363
    %v1365 = vpop.f32.mrf.mxu0
    %v1366 = vadd.f32 %v1286, %v1365
    %v1367 = vpop.f32.mrf.mxu0
    %v1368 = vpop.f32.mrf.mxu0
    %1369 = vdwg.mxu0
    %v1370 = vxor.u32 %v1323, 2147483648
    %v1371 = vxor.u32 %v1325, 2147483648
    %v1372 = vxor.u32 %v1364, 2147483648
    %v1373 = vmul.f32 %v1370, 1.442695
    %v1374 = vpow.pop %v1373
    %v1375 = vmul.f32 %v1371, 1.442695
    %v1376 = vpow.pop %v1375
    %v1377 = vmul.f32 %v1372, 1.442695
    %v1378 = vpow.pop %v1377
    %v1379 = vadd.f32 %v1374, 1.0
    %v1380 = vadd.f32 %v1376, 1.0
    %v1381 = vadd.f32 %v1378, 1.0
    %v1382 = vrcp.pop %v1379
    %v1383 = vmul.f32 1.0, %v1382
    %v1384 = vrcp.pop %v1380
    %v1385 = vmul.f32 1.0, %v1384
    %v1386 = vrcp.pop %v1381
    %v1387 = vmul.f32 1.0, %v1386
    %v1388 = vtanh.pop %v1366
    %v1389 = vmul.f32 %v1385, %v1277
    %v1390 = vmul.f32 %v1383, %v1388
    %v1391 = vadd.f32 %v1389, %v1390
    %v1392 = vtanh.pop %v1391
    %v1393 = vmul.f32 %v1387, %v1392
    %s1394 = smul.u32 5, 4
    %s1395 = smul.addr %s1394, 8
    %s1396 = scalar_lea.vmem [#allocation2], %s1395
    %v1397 = vld [vmem:[%s1396] sm:$0xff]
    %v1398 = vld [vmem:[%s1396 + $0x8] sm:$0xff]
    %v1399 = vld [vmem:[%s1396 + $0x10] sm:$0xff]
    %v1400 = vld [vmem:[%s1396 + $0x18] sm:$0xff]
    %v1401 = vpack.c.bf16 %v1393, %v1393
    %1402 = vmatprep.subr.bf16.mxu0 %v797
    %1403 = vmatpush1.bf16.msra.mxu0 %v796
    %1404 = vmatprep.subr.bf16.mxu0 %v793
    %1405 = vmatpush1.bf16.msra.mxu0 %v792
    %1406 = vmatprep.subr.bf16.mxu0 %v789
    %1407 = vmatpush1.bf16.msra.mxu0 %v788
    %1408 = vmatprep.subr.bf16.mxu0 %v785
    %1409 = vmatpush1.bf16.msra.mxu0 %v784
    %1410 = vmatprep.subr.bf16.mxu0 %v781
    %1411 = vmatpush1.bf16.msra.mxu0 %v780
    %1412 = vmatprep.subr.bf16.mxu0 %v777
    %1413 = vmatpush1.bf16.msra.mxu0 %v776
    %1414 = vmatprep.subr.bf16.mxu0 %v773
    %1415 = vmatpush1.bf16.msra.mxu0 %v772
    %1416 = vmatprep.subr.bf16.mxu0 %v769
    %1417 = vmatpush1.bf16.msra.mxu0 %v768
    %1418 = vmatprep.subr.bf16.mxu0 0
    %1419 = vmatpush2.bf16.msra.mxu0 0
    %1420 = vmatprep.subr.bf16.mxu0 0
    %1421 = vmatpush2.bf16.msra.mxu0 0
    %1422 = vmatprep.subr.bf16.mxu0 0
    %1423 = vmatpush2.bf16.msra.mxu0 0
    %1424 = vmatprep.subr.bf16.mxu0 0
    %1425 = vmatpush2.bf16.msra.mxu0 0
    %1426 = vmatprep.subr.bf16.mxu0 0
    %1427 = vmatpush2.bf16.msra.mxu0 0
    %1428 = vmatprep.subr.bf16.mxu0 0
    %1429 = vmatpush2.bf16.msra.mxu0 0
    %1430 = vmatprep.subr.bf16.mxu0 0
    %1431 = vmatpush2.bf16.msra.mxu0 0
    %1432 = vmatprep.subr.bf16.mxu0 0
    %1433 = vmatpush2.bf16.msra.mxu0 0
    %1434 = vmatprep.mubr.bf16.mxu0 0
    %1435 = vmatmul.mubr.bf16.gmra.mxu0 %v1401
    %v1436 = vpop.f32.mrf.mxu0
    %v1437 = vadd.f32 %v1397, %v1436
    %v1438 = vpop.f32.mrf.mxu0
    %v1439 = vadd.f32 %v1398, %v1438
    %v1440 = vpop.f32.mrf.mxu0
    %v1441 = vpop.f32.mrf.mxu0
    %1442 = vdwg.mxu0
    %1443 = vmatprep.subr.bf16.mxu0 %v799
    %1444 = vmatpush1.bf16.msra.mxu0 %v798
    %1445 = vmatprep.subr.bf16.mxu0 %v795
    %1446 = vmatpush1.bf16.msra.mxu0 %v794
    %1447 = vmatprep.subr.bf16.mxu0 %v791
    %1448 = vmatpush1.bf16.msra.mxu0 %v790
    %1449 = vmatprep.subr.bf16.mxu0 %v787
    %1450 = vmatpush1.bf16.msra.mxu0 %v786
    %1451 = vmatprep.subr.bf16.mxu0 %v783
    %1452 = vmatpush1.bf16.msra.mxu0 %v782
    %1453 = vmatprep.subr.bf16.mxu0 %v779
    %1454 = vmatpush1.bf16.msra.mxu0 %v778
    %1455 = vmatprep.subr.bf16.mxu0 %v775
    %1456 = vmatpush1.bf16.msra.mxu0 %v774
    %1457 = vmatprep.subr.bf16.mxu0 %v771
    %1458 = vmatpush1.bf16.msra.mxu0 %v770
    %1459 = vmatprep.subr.bf16.mxu0 0
    %1460 = vmatpush2.bf16.msra.mxu0 0
    %1461 = vmatprep.subr.bf16.mxu0 0
    %1462 = vmatpush2.bf16.msra.mxu0 0
    %1463 = vmatprep.subr.bf16.mxu0 0
    %1464 = vmatpush2.bf16.msra.mxu0 0
    %1465 = vmatprep.subr.bf16.mxu0 0
    %1466 = vmatpush2.bf16.msra.mxu0 0
    %1467 = vmatprep.subr.bf16.mxu0 0
    %1468 = vmatpush2.bf16.msra.mxu0 0
    %1469 = vmatprep.subr.bf16.mxu0 0
    %1470 = vmatpush2.bf16.msra.mxu0 0
    %1471 = vmatprep.subr.bf16.mxu0 0
    %1472 = vmatpush2.bf16.msra.mxu0 0
    %1473 = vmatprep.subr.bf16.mxu0 0
    %1474 = vmatpush2.bf16.msra.mxu0 0
    %1475 = vmatprep.mubr.bf16.mxu0 0
    %1476 = vmatmul.mubr.bf16.gmra.mxu0 %v1401
    %v1477 = vpop.f32.mrf.mxu0
    %v1478 = vadd.f32 %v1399, %v1477
    %v1479 = vpop.f32.mrf.mxu0
    %v1480 = vadd.f32 %v1400, %v1479
    %v1481 = vpop.f32.mrf.mxu0
    %v1482 = vpop.f32.mrf.mxu0
    %1483 = vdwg.mxu0
    %v1484 = vxor.u32 %v1437, 2147483648
    %v1485 = vxor.u32 %v1439, 2147483648
    %v1486 = vxor.u32 %v1478, 2147483648
    %v1487 = vmul.f32 %v1484, 1.442695
    %v1488 = vpow.pop %v1487
    %v1489 = vmul.f32 %v1485, 1.442695
    %v1490 = vpow.pop %v1489
    %v1491 = vmul.f32 %v1486, 1.442695
    %v1492 = vpow.pop %v1491
    %v1493 = vadd.f32 %v1488, 1.0
    %v1494 = vadd.f32 %v1490, 1.0
    %v1495 = vadd.f32 %v1492, 1.0
    %v1496 = vrcp.pop %v1493
    %v1497 = vmul.f32 1.0, %v1496
    %v1498 = vrcp.pop %v1494
    %v1499 = vmul.f32 1.0, %v1498
    %v1500 = vrcp.pop %v1495
    %v1501 = vmul.f32 1.0, %v1500
    %v1502 = vtanh.pop %v1480
    %v1503 = vmul.f32 %v1499, %v1391
    %v1504 = vmul.f32 %v1497, %v1502
    %v1505 = vadd.f32 %v1503, %v1504
    %v1506 = vtanh.pop %v1505
    %v1507 = vmul.f32 %v1501, %v1506
    %s1508 = smul.u32 6, 4
    %s1509 = smul.addr %s1508, 8
    %s1510 = scalar_lea.vmem [#allocation2], %s1509
    %v1511 = vld [vmem:[%s1510] sm:$0xff]
    %v1512 = vld [vmem:[%s1510 + $0x8] sm:$0xff]
    %v1513 = vld [vmem:[%s1510 + $0x10] sm:$0xff]
    %v1514 = vld [vmem:[%s1510 + $0x18] sm:$0xff]
    %v1515 = vpack.c.bf16 %v1507, %v1507
    %1516 = vmatprep.subr.bf16.mxu0 %v797
    %1517 = vmatpush1.bf16.msra.mxu0 %v796
    %1518 = vmatprep.subr.bf16.mxu0 %v793
    %1519 = vmatpush1.bf16.msra.mxu0 %v792
    %1520 = vmatprep.subr.bf16.mxu0 %v789
    %1521 = vmatpush1.bf16.msra.mxu0 %v788
    %1522 = vmatprep.subr.bf16.mxu0 %v785
    %1523 = vmatpush1.bf16.msra.mxu0 %v784
    %1524 = vmatprep.subr.bf16.mxu0 %v781
    %1525 = vmatpush1.bf16.msra.mxu0 %v780
    %1526 = vmatprep.subr.bf16.mxu0 %v777
    %1527 = vmatpush1.bf16.msra.mxu0 %v776
    %1528 = vmatprep.subr.bf16.mxu0 %v773
    %1529 = vmatpush1.bf16.msra.mxu0 %v772
    %1530 = vmatprep.subr.bf16.mxu0 %v769
    %1531 = vmatpush1.bf16.msra.mxu0 %v768
    %1532 = vmatprep.subr.bf16.mxu0 0
    %1533 = vmatpush2.bf16.msra.mxu0 0
    %1534 = vmatprep.subr.bf16.mxu0 0
    %1535 = vmatpush2.bf16.msra.mxu0 0
    %1536 = vmatprep.subr.bf16.mxu0 0
    %1537 = vmatpush2.bf16.msra.mxu0 0
    %1538 = vmatprep.subr.bf16.mxu0 0
    %1539 = vmatpush2.bf16.msra.mxu0 0
    %1540 = vmatprep.subr.bf16.mxu0 0
    %1541 = vmatpush2.bf16.msra.mxu0 0
    %1542 = vmatprep.subr.bf16.mxu0 0
    %1543 = vmatpush2.bf16.msra.mxu0 0
    %1544 = vmatprep.subr.bf16.mxu0 0
    %1545 = vmatpush2.bf16.msra.mxu0 0
    %1546 = vmatprep.subr.bf16.mxu0 0
    %1547 = vmatpush2.bf16.msra.mxu0 0
    %1548 = vmatprep.mubr.bf16.mxu0 0
    %1549 = vmatmul.mubr.bf16.gmra.mxu0 %v1515
    %v1550 = vpop.f32.mrf.mxu0
    %v1551 = vadd.f32 %v1511, %v1550
    %v1552 = vpop.f32.mrf.mxu0
    %v1553 = vadd.f32 %v1512, %v1552
    %v1554 = vpop.f32.mrf.mxu0
    %v1555 = vpop.f32.mrf.mxu0
    %1556 = vdwg.mxu0
    %1557 = vmatprep.subr.bf16.mxu0 %v799
    %1558 = vmatpush1.bf16.msra.mxu0 %v798
    %1559 = vmatprep.subr.bf16.mxu0 %v795
    %1560 = vmatpush1.bf16.msra.mxu0 %v794
    %1561 = vmatprep.subr.bf16.mxu0 %v791
    %1562 = vmatpush1.bf16.msra.mxu0 %v790
    %1563 = vmatprep.subr.bf16.mxu0 %v787
    %1564 = vmatpush1.bf16.msra.mxu0 %v786
    %1565 = vmatprep.subr.bf16.mxu0 %v783
    %1566 = vmatpush1.bf16.msra.mxu0 %v782
    %1567 = vmatprep.subr.bf16.mxu0 %v779
    %1568 = vmatpush1.bf16.msra.mxu0 %v778
    %1569 = vmatprep.subr.bf16.mxu0 %v775
    %1570 = vmatpush1.bf16.msra.mxu0 %v774
    %1571 = vmatprep.subr.bf16.mxu0 %v771
    %1572 = vmatpush1.bf16.msra.mxu0 %v770
    %1573 = vmatprep.subr.bf16.mxu0 0
    %1574 = vmatpush2.bf16.msra.mxu0 0
    %1575 = vmatprep.subr.bf16.mxu0 0
    %1576 = vmatpush2.bf16.msra.mxu0 0
    %1577 = vmatprep.subr.bf16.mxu0 0
    %1578 = vmatpush2.bf16.msra.mxu0 0
    %1579 = vmatprep.subr.bf16.mxu0 0
    %1580 = vmatpush2.bf16.msra.mxu0 0
    %1581 = vmatprep.subr.bf16.mxu0 0
    %1582 = vmatpush2.bf16.msra.mxu0 0
    %1583 = vmatprep.subr.bf16.mxu0 0
    %1584 = vmatpush2.bf16.msra.mxu0 0
    %1585 = vmatprep.subr.bf16.mxu0 0
    %1586 = vmatpush2.bf16.msra.mxu0 0
    %1587 = vmatprep.subr.bf16.mxu0 0
    %1588 = vmatpush2.bf16.msra.mxu0 0
    %1589 = vmatprep.mubr.bf16.mxu0 0
    %1590 = vmatmul.mubr.bf16.gmra.mxu0 %v1515
    %v1591 = vpop.f32.mrf.mxu0
    %v1592 = vadd.f32 %v1513, %v1591
    %v1593 = vpop.f32.mrf.mxu0
    %v1594 = vadd.f32 %v1514, %v1593
    %v1595 = vpop.f32.mrf.mxu0
    %v1596 = vpop.f32.mrf.mxu0
    %1597 = vdwg.mxu0
    %v1598 = vxor.u32 %v1551, 2147483648
    %v1599 = vxor.u32 %v1553, 2147483648
    %v1600 = vxor.u32 %v1592, 2147483648
    %v1601 = vmul.f32 %v1598, 1.442695
    %v1602 = vpow.pop %v1601
    %v1603 = vmul.f32 %v1599, 1.442695
    %v1604 = vpow.pop %v1603
    %v1605 = vmul.f32 %v1600, 1.442695
    %v1606 = vpow.pop %v1605
    %v1607 = vadd.f32 %v1602, 1.0
    %v1608 = vadd.f32 %v1604, 1.0
    %v1609 = vadd.f32 %v1606, 1.0
    %v1610 = vrcp.pop %v1607
    %v1611 = vmul.f32 1.0, %v1610
    %v1612 = vrcp.pop %v1608
    %v1613 = vmul.f32 1.0, %v1612
    %v1614 = vrcp.pop %v1609
    %v1615 = vmul.f32 1.0, %v1614
    %v1616 = vtanh.pop %v1594
    %v1617 = vmul.f32 %v1613, %v1505
    %v1618 = vmul.f32 %v1611, %v1616
    %v1619 = vadd.f32 %v1617, %v1618
    %v1620 = vtanh.pop %v1619
    %v1621 = vmul.f32 %v1615, %v1620
    %s1622 = smul.u32 7, 4
    %s1623 = smul.addr %s1622, 8
    %s1624 = scalar_lea.vmem [#allocation2], %s1623
    %v1625 = vld [vmem:[%s1624] sm:$0xff]
    %v1626 = vld [vmem:[%s1624 + $0x8] sm:$0xff]
    %v1627 = vld [vmem:[%s1624 + $0x10] sm:$0xff]
    %v1628 = vld [vmem:[%s1624 + $0x18] sm:$0xff]
    %v1629 = vpack.c.bf16 %v1621, %v1621
    %1630 = vmatprep.subr.bf16.mxu0 %v797
    %1631 = vmatpush1.bf16.msra.mxu0 %v796
    %1632 = vmatprep.subr.bf16.mxu0 %v793
    %1633 = vmatpush1.bf16.msra.mxu0 %v792
    %1634 = vmatprep.subr.bf16.mxu0 %v789
    %1635 = vmatpush1.bf16.msra.mxu0 %v788
    %1636 = vmatprep.subr.bf16.mxu0 %v785
    %1637 = vmatpush1.bf16.msra.mxu0 %v784
    %1638 = vmatprep.subr.bf16.mxu0 %v781
    %1639 = vmatpush1.bf16.msra.mxu0 %v780
    %1640 = vmatprep.subr.bf16.mxu0 %v777
    %1641 = vmatpush1.bf16.msra.mxu0 %v776
    %1642 = vmatprep.subr.bf16.mxu0 %v773
    %1643 = vmatpush1.bf16.msra.mxu0 %v772
    %1644 = vmatprep.subr.bf16.mxu0 %v769
    %1645 = vmatpush1.bf16.msra.mxu0 %v768
    %1646 = vmatprep.subr.bf16.mxu0 0
    %1647 = vmatpush2.bf16.msra.mxu0 0
    %1648 = vmatprep.subr.bf16.mxu0 0
    %1649 = vmatpush2.bf16.msra.mxu0 0
    %1650 = vmatprep.subr.bf16.mxu0 0
    %1651 = vmatpush2.bf16.msra.mxu0 0
    %1652 = vmatprep.subr.bf16.mxu0 0
    %1653 = vmatpush2.bf16.msra.mxu0 0
    %1654 = vmatprep.subr.bf16.mxu0 0
    %1655 = vmatpush2.bf16.msra.mxu0 0
    %1656 = vmatprep.subr.bf16.mxu0 0
    %1657 = vmatpush2.bf16.msra.mxu0 0
    %1658 = vmatprep.subr.bf16.mxu0 0
    %1659 = vmatpush2.bf16.msra.mxu0 0
    %1660 = vmatprep.subr.bf16.mxu0 0
    %1661 = vmatpush2.bf16.msra.mxu0 0
    %1662 = vmatprep.mubr.bf16.mxu0 0
    %1663 = vmatmul.mubr.bf16.gmra.mxu0 %v1629
    %v1664 = vpop.f32.mrf.mxu0
    %v1665 = vadd.f32 %v1625, %v1664
    %v1666 = vpop.f32.mrf.mxu0
    %v1667 = vadd.f32 %v1626, %v1666
    %v1668 = vpop.f32.mrf.mxu0
    %v1669 = vpop.f32.mrf.mxu0
    %1670 = vdwg.mxu0
    %1671 = vmatprep.subr.bf16.mxu0 %v799
    %1672 = vmatpush1.bf16.msra.mxu0 %v798
    %1673 = vmatprep.subr.bf16.mxu0 %v795
    %1674 = vmatpush1.bf16.msra.mxu0 %v794
    %1675 = vmatprep.subr.bf16.mxu0 %v791
    %1676 = vmatpush1.bf16.msra.mxu0 %v790
    %1677 = vmatprep.subr.bf16.mxu0 %v787
    %1678 = vmatpush1.bf16.msra.mxu0 %v786
    %1679 = vmatprep.subr.bf16.mxu0 %v783
    %1680 = vmatpush1.bf16.msra.mxu0 %v782
    %1681 = vmatprep.subr.bf16.mxu0 %v779
    %1682 = vmatpush1.bf16.msra.mxu0 %v778
    %1683 = vmatprep.subr.bf16.mxu0 %v775
    %1684 = vmatpush1.bf16.msra.mxu0 %v774
    %1685 = vmatprep.subr.bf16.mxu0 %v771
    %1686 = vmatpush1.bf16.msra.mxu0 %v770
    %1687 = vmatprep.subr.bf16.mxu0 0
    %1688 = vmatpush2.bf16.msra.mxu0 0
    %1689 = vmatprep.subr.bf16.mxu0 0
    %1690 = vmatpush2.bf16.msra.mxu0 0
    %1691 = vmatprep.subr.bf16.mxu0 0
    %1692 = vmatpush2.bf16.msra.mxu0 0
    %1693 = vmatprep.subr.bf16.mxu0 0
    %1694 = vmatpush2.bf16.msra.mxu0 0
    %1695 = vmatprep.subr.bf16.mxu0 0
    %1696 = vmatpush2.bf16.msra.mxu0 0
    %1697 = vmatprep.subr.bf16.mxu0 0
    %1698 = vmatpush2.bf16.msra.mxu0 0
    %1699 = vmatprep.subr.bf16.mxu0 0
    %1700 = vmatpush2.bf16.msra.mxu0 0
    %1701 = vmatprep.subr.bf16.mxu0 0
    %1702 = vmatpush2.bf16.msra.mxu0 0
    %1703 = vmatprep.mubr.bf16.mxu0 0
    %1704 = vmatmul.mubr.bf16.gmra.mxu0 %v1629
    %v1705 = vpop.f32.mrf.mxu0
    %v1706 = vadd.f32 %v1627, %v1705
    %v1707 = vpop.f32.mrf.mxu0
    %v1708 = vadd.f32 %v1628, %v1707
    %v1709 = vpop.f32.mrf.mxu0
    %v1710 = vpop.f32.mrf.mxu0
    %1711 = vdwg.mxu0
    %v1712 = vxor.u32 %v1665, 2147483648
    %v1713 = vxor.u32 %v1667, 2147483648
    %v1714 = vxor.u32 %v1706, 2147483648
    %v1715 = vmul.f32 %v1712, 1.442695
    %v1716 = vpow.pop %v1715
    %v1717 = vmul.f32 %v1713, 1.442695
    %v1718 = vpow.pop %v1717
    %v1719 = vmul.f32 %v1714, 1.442695
    %v1720 = vpow.pop %v1719
    %v1721 = vadd.f32 %v1716, 1.0
    %v1722 = vadd.f32 %v1718, 1.0
    %v1723 = vadd.f32 %v1720, 1.0
    %v1724 = vrcp.pop %v1721
    %v1725 = vmul.f32 1.0, %v1724
    %v1726 = vrcp.pop %v1722
    %v1727 = vmul.f32 1.0, %v1726
    %v1728 = vrcp.pop %v1723
    %v1729 = vmul.f32 1.0, %v1728
    %v1730 = vtanh.pop %v1708
    %v1731 = vmul.f32 %v1727, %v1619
    %v1732 = vmul.f32 %v1725, %v1730
    %v1733 = vadd.f32 %v1731, %v1732
    %v1734 = vtanh.pop %v1733
    %v1735 = vmul.f32 %v1729, %v1734
    %s1736 = sld [smem:[#allocation3]]
    %vm1737 = vcmp.gt.f32.partialorder %v1735, 0.0
    %v1738 = vstv %s1736
    %v1739 = vmul.f32 %v1738, %v1735
    %v1740 = vsel %vm1737, %v1735, %v1739
    %1741 = vst [vmem:[#allocation12] sm:$0xff] %v1740
    %v1742 = vpack.c.bf16 %v1740, %v1740
    %v1743 = vld [vmem:[#allocation10] sm:$0xf]
    %v1744 = vld [vmem:[#allocation10 + $0x4] sm:$0xf]
    %v1745 = vld [vmem:[#allocation10 + $0x8] sm:$0xf]
    %v1746 = vld [vmem:[#allocation10 + $0xc] sm:$0xf]
    %v1747 = vld [vmem:[#allocation10 + $0x10] sm:$0xf]
    %v1748 = vld [vmem:[#allocation10 + $0x14] sm:$0xf]
    %v1749 = vld [vmem:[#allocation10 + $0x18] sm:$0xf]
    %v1750 = vld [vmem:[#allocation10 + $0x1c] sm:$0xf]
    %v1751 = vld [vmem:[#allocation10 + $0x20] sm:$0xf]
    %v1752 = vld [vmem:[#allocation10 + $0x24] sm:$0xf]
    %v1753 = vld [vmem:[#allocation10 + $0x28] sm:$0xf]
    %v1754 = vld [vmem:[#allocation10 + $0x2c] sm:$0xf]
    %v1755 = vld [vmem:[#allocation10 + $0x30] sm:$0xf]
    %v1756 = vld [vmem:[#allocation10 + $0x34] sm:$0xf]
    %v1757 = vld [vmem:[#allocation10 + $0x38] sm:$0xf]
    %v1758 = vld [vmem:[#allocation10 + $0x3c] sm:$0xf]
    %v1759 = vld [vmem:[%s6] sm:$0x1]
    %v1761 = vlaneseq
    %v1762 = vshrl.u32 %v1761, 7
    %v1763 = vsub.s32 0, %v1762
    %v1764 = vrot.slane %v1759, %v1763
    %v1782 = vunpack.c.l.b16 %v1743
    %v1783 = vunpack.c.l.b16 %v1744
    %v1784 = vunpack.c.l.b16 %v1745
    %v1785 = vunpack.c.l.b16 %v1746
    %v1786 = vunpack.c.l.b16 %v1747
    %v1787 = vunpack.c.l.b16 %v1748
    %v1788 = vunpack.c.l.b16 %v1749
    %v1789 = vunpack.c.l.b16 %v1750
    %v1790 = vunpack.c.l.b16 %v1751
    %v1791 = vunpack.c.l.b16 %v1752
    %v1792 = vunpack.c.l.b16 %v1753
    %v1793 = vunpack.c.l.b16 %v1754
    %v1794 = vunpack.c.l.b16 %v1755
    %v1795 = vunpack.c.l.b16 %v1756
    %v1796 = vunpack.c.l.b16 %v1757
    %v1797 = vunpack.c.l.b16 %v1758
    %v1798 = vpack.c.b16 %v1783, %v1782
    %v1799 = vpack.c.b16 %v1785, %v1784
    %v1800 = vpack.c.b16 %v1787, %v1786
    %v1801 = vpack.c.b16 %v1789, %v1788
    %v1802 = vpack.c.b16 %v1791, %v1790
    %v1803 = vpack.c.b16 %v1793, %v1792
    %v1804 = vpack.c.b16 %v1795, %v1794
    %v1805 = vpack.c.b16 %v1797, %v1796
    %1814 = vmatprep.subr.bf16.mxu0 0
    %1815 = vmatpush1.bf16.msra.mxu0 %v1805
    %1816 = vmatprep.subr.bf16.mxu0 0
    %1817 = vmatpush1.bf16.msra.mxu0 %v1804
    %1818 = vmatprep.subr.bf16.mxu0 0
    %1819 = vmatpush1.bf16.msra.mxu0 %v1803
    %1820 = vmatprep.subr.bf16.mxu0 0
    %1821 = vmatpush1.bf16.msra.mxu0 %v1802
    %1822 = vmatprep.subr.bf16.mxu0 0
    %1823 = vmatpush1.bf16.msra.mxu0 %v1801
    %1824 = vmatprep.subr.bf16.mxu0 0
    %1825 = vmatpush1.bf16.msra.mxu0 %v1800
    %1826 = vmatprep.subr.bf16.mxu0 0
    %1827 = vmatpush1.bf16.msra.mxu0 %v1799
    %1828 = vmatprep.subr.bf16.mxu0 0
    %1829 = vmatpush1.bf16.msra.mxu0 %v1798
    %1830 = vmatprep.subr.bf16.mxu0 0
    %1831 = vmatpush2.bf16.msra.mxu0 0
    %1832 = vmatprep.subr.bf16.mxu0 0
    %1833 = vmatpush2.bf16.msra.mxu0 0
    %1834 = vmatprep.subr.bf16.mxu0 0
    %1835 = vmatpush2.bf16.msra.mxu0 0
    %1836 = vmatprep.subr.bf16.mxu0 0
    %1837 = vmatpush2.bf16.msra.mxu0 0
    %1838 = vmatprep.subr.bf16.mxu0 0
    %1839 = vmatpush2.bf16.msra.mxu0 0
    %1840 = vmatprep.subr.bf16.mxu0 0
    %1841 = vmatpush2.bf16.msra.mxu0 0
    %1842 = vmatprep.subr.bf16.mxu0 0
    %1843 = vmatpush2.bf16.msra.mxu0 0
    %1844 = vmatprep.subr.bf16.mxu0 0
    %1845 = vmatpush2.bf16.msra.mxu0 0
    %1846 = vmatprep.mubr.bf16.mxu0 0
    %1847 = vmatmul.mubr.bf16.gmra.mxu0 %v1742
    %v1848 = vpop.f32.mrf.mxu0
    %v1849 = vadd.f32 %v1764, %v1848
    %v1850 = vpop.f32.mrf.mxu0
    %v1851 = vpop.f32.mrf.mxu0
    %v1852 = vpop.f32.mrf.mxu0
    %1853 = vdwg.mxu0
    %1854 = vst [vmem:[#allocation13] sm:$0xff] %v1849
    // Predicated region
    $region46: #{tpu_custom_call.1} parent=1 // pred_check
      _
    $region47: #{tpu_custom_call.1} parent=1 // pred_check_branch
      %1856 = sbr.rel (0) target = $region49
    $region48: #{tpu_custom_call.1} parent=1 // pred_region
      %s1858 = ssub.s32 128, 128
      %1859 = vsyncadd [#allocation6], %s1858
      %s1861 = sshll.u32 [#allocation12], 4
      %s1862 = int_to_ptr.vmem [resolvable:$true] %s1861
      %1864 = dma.vmem_to_hbm [thread:$0]  %s1862, 128, %s7, [#allocation6]
    $region49: #{tpu_custom_call.1} parent=1 // pred_fallthru
      _
    // Predicated region
    $region50: #{tpu_custom_call.1} parent=1 // pred_check
      _
    $region51: #{tpu_custom_call.1} parent=1 // pred_check_branch
      %1866 = sbr.rel (0) target = $region53
    $region52: #{tpu_custom_call.1} parent=1 // pred_region
      %s1868 = ssub.s32 128, 128
      %1869 = vsyncadd [#allocation14], %s1868
      %s1871 = sshll.u32 [#allocation13], 4
      %s1872 = int_to_ptr.vmem [resolvable:$true] %s1871
      %1874 = dma.vmem_to_hbm [thread:$0]  %s1872, 128, %s8, [#allocation14]
    $region53: #{tpu_custom_call.1} parent=1 // pred_fallthru
      _
    // Predicated region
    $region54: #{tpu_custom_call.1} parent=1 // pred_check
      _
    $region55: #{tpu_custom_call.1} parent=1 // pred_check_branch
      %1876 = sbr.rel (0) target = $region57
    $region56: #{tpu_custom_call.1} parent=1 // pred_region
      %1877 = dma.done [#allocation6], 128
    $region57: #{tpu_custom_call.1} parent=1 // pred_fallthru
      _
    // Predicated region
    $region58: #{tpu_custom_call.1} parent=1 // pred_check
      _
    $region59: #{tpu_custom_call.1} parent=1 // pred_check_branch
      %1879 = sbr.rel (0) target = $region61
    $region60: #{tpu_custom_call.1} parent=1 // pred_region
      %1880 = dma.done [#allocation14], 128
    $region61: #{tpu_custom_call.1} parent=1 // pred_fallthru
      _
    %1881 = vsyncpa [#allocation5], 1
    %1882 = vsyncpa [#allocation8], 1
    %1883 = vsyncpa [#allocation11], 1
    %1884 = vsyncpa [#allocation6], 1
    %1885 = vsyncpa [#allocation14], 1

</llo_original>
